<compile_context>
chip_gen: v5e
topology: v5e:2x2
jax: 0.10.0
libtpu: 0.0.40
codegen_flags: <defaults>
</compile_context>

<pallas_src>
import numpy as np
import jax
import jax.numpy as jnp
from jax import lax
from jax.experimental import pallas as pl
from jax.experimental.pallas import tpu as pltpu

# ---------------- model configuration (small, consistent with the module) ---
TT_INPUT_SHAPE = (4, 4, 4)            # prod = 64 = C*H*W
TT_OUTPUT_SHAPE = (4, 4, 4)           # units = 64 (before gate x4)
TT_RANKS = (1, 4, 4, 1)
BATCH = 2
SEQ = 8
C, H, W = 4, 4, 4
CLS_HIDDEN = 50
NUM_CLASSES = 11
LEAKY_SLOPE = 0.01                    # nn.LeakyReLU default negative_slope
LANE = 128                            # TPU lane width (head-column padding)
SUBLANE = 8                           # TPU sublane tile (batch padding)


def _hardsigmoid(x):
    # torch.nn.Hardsigmoid: clip(x/6 + 1/2, 0, 1); multiply form -> one VPU mul.
    return jnp.clip(x * (1.0 / 6.0) + 0.5, 0.0, 1.0)


# ------------------------------ parameters ----------------------------------
def init_params(key):
    """Deterministic parameter init mirroring TT_LSTM.__init__ shapes."""
    tt_in = np.array(TT_INPUT_SHAPE)
    tt_out = np.array(TT_OUTPUT_SHAPE)
    units = int(np.prod(tt_out))
    tt_out4 = tt_out.copy()
    tt_out4[0] *= 4                    # gates folded into first TT output dim
    ranks = np.array(TT_RANKS)
    num_dim = len(tt_in)

    kernel_size = int(np.sum(tt_in * tt_out4 * ranks[1:] * ranks[:-1]))

    ks = jax.random.split(key, 6)
    kernel = jax.random.uniform(ks[0], (kernel_size,), jnp.float32, -0.1, 0.1)
    w_rec = jax.random.uniform(ks[1], (units, units * 4), jnp.float32, -0.1, 0.1)
    w1 = jax.random.uniform(ks[2], (units, CLS_HIDDEN), jnp.float32, -0.1, 0.1)
    b1 = jax.random.uniform(ks[3], (CLS_HIDDEN,), jnp.float32, -0.1, 0.1)
    w2 = jax.random.uniform(ks[4], (CLS_HIDDEN, NUM_CLASSES), jnp.float32, -0.1, 0.1)
    b2 = jax.random.uniform(ks[5], (NUM_CLASSES,), jnp.float32, -0.1, 0.1)

    # Slice the flat TT kernel into cores exactly as the PyTorch module does.
    inds = np.zeros(num_dim, dtype=int)
    shapes = np.zeros((num_dim, 2), dtype=int)
    cores = [None] * num_dim
    for k in range(num_dim - 1, -1, -1):
        shapes[k][0] = tt_in[k] * ranks[k + 1]
        shapes[k][1] = ranks[k] * tt_out4[k]
        cores[k] = kernel[inds[k]: inds[k] + int(np.prod(shapes[k]))]
        if k > 0:
            inds[k - 1] = inds[k] + int(np.prod(shapes[k]))

    return dict(cores=cores, shapes=shapes, tt_out4=tt_out4, units=units,
                w_rec=w_rec, w1=w1, b1=b1, w2=w2, b2=b2)


def tt_contract(x2d, params):
    """Exact replica of the TT contraction chain from TT_LSTM.cell (pure JAX)."""
    num_dim = len(TT_INPUT_SHAPE)
    res = x2d
    for k in range(num_dim - 1, -1, -1):
        r = int(params['shapes'][k][0])
        c = int(params['shapes'][k][1])
        res = res.reshape(-1, r) @ params['cores'][k].reshape(r, c)
        res = res.reshape(-1, int(params['tt_out4'][k])).T
    res = res.reshape(-1, x2d.shape[0]).T
    return res


def tt_dense_weight(params):
    """Fold TT cores into the equivalent dense (D_in, 4*units) matrix: TT(I)."""
    d_in = int(np.prod(TT_INPUT_SHAPE))
    return tt_contract(jnp.eye(d_in, dtype=jnp.float32), params)


# ------------------------------ Pallas kernel -------------------------------
def build_tt_lstm_call(B_pad, T, units):
    G = 4 * units                       # natural gate layout (no lane padding)
    w2_row0 = units                     # packed-head row offsets
    b1_row0 = units + LANE
    b2_row0 = b1_row0 + B_pad

    def kernel(x_ref, wtt_ref, wrec_ref, head_ref, out_ref, zx_ref):
        # 1) Hoisted non-recurrent input projection: one MXU matmul over all
        #    T*B_pad rows.  Runs once, off the serial critical path -> f32.
        zx_ref[...] = jnp.dot(x_ref[...], wtt_ref[...],
                              preferred_element_type=jnp.float32)

        # 2) Recurrence: h/c carried in vregs; fully unrolled for LLO
        #    visibility.  W_rec is re-read from VMEM each step (bounded live
        #    range) and is bf16 -> single MXU pass per step, f32 accumulate.
        def step(t, carry):
            h, c = carry
            row = pl.multiple_of(t * B_pad, B_pad)       # 8-row aligned slice
            z = zx_ref[pl.ds(row, B_pad), :] + jnp.dot(
                h.astype(jnp.bfloat16), wrec_ref[...],
                preferred_element_type=jnp.float32)
            # Natural 64-wide gate slices (i, f, g, o); elementwise math in f32.
            i = _hardsigmoid(z[:, 0 * units:1 * units])
            f = _hardsigmoid(z[:, 1 * units:2 * units])
            g = jnp.tanh(z[:, 2 * units:3 * units])
            o = _hardsigmoid(z[:, 3 * units:4 * units])
            c_new = f * c + i * g
            h_new = o * jnp.tanh(c_new)
            return h_new, c_new

        h0 = jnp.zeros((B_pad, units), jnp.float32)
        c0 = jnp.zeros((B_pad, units), jnp.float32)
        h_last, _ = lax.fori_loop(0, T, step, (h0, c0), unroll=True)

        # 3) Classifier head, once: Linear -> LeakyReLU -> Linear.  All
        #    parameters come from the single packed (208, 128) array; the
        #    output store is a full (8, 128) vreg (unmasked vst).
        w1 = head_ref[0:units, :]                        # (units, 128)
        w2 = head_ref[w2_row0:w2_row0 + LANE, :]         # (128, 128)
        b1 = head_ref[b1_row0:b1_row0 + B_pad, :]        # (B_pad, 128) replicated
        b2 = head_ref[b2_row0:b2_row0 + B_pad, :]        # (B_pad, 128) replicated
        hid = jnp.dot(h_last, w1, preferred_element_type=jnp.float32) + b1
        hid = jnp.where(hid >= 0, hid, LEAKY_SLOPE * hid)
        out_ref[...] = jnp.dot(hid, w2,
                               preferred_element_type=jnp.float32) + b2

    vmem = lambda: pl.BlockSpec(memory_space=pltpu.MemorySpace.VMEM)
    return pl.pallas_call(
        kernel,
        out_shape=jax.ShapeDtypeStruct((B_pad, LANE), jnp.float32),
        in_specs=[vmem() for _ in range(4)],
        out_specs=vmem(),
        scratch_shapes=[pltpu.VMEM((T * B_pad, G), jnp.float32)],  # hoisted x@W_tt
    )


def tt_lstm_forward(x, params):
    B, T = x.shape[0], x.shape[1]
    D_in = int(np.prod(x.shape[2:]))
    units = params['units']
    B_pad = int(np.ceil(B / SUBLANE) * SUBLANE)          # pad batch 2 -> 8

    # Time-major, batch-padded, frame-flattened input: row t*B_pad + b.
    # Zero pad rows keep h/c exactly 0 through the recurrence (z_pad = 0,
    # c_pad = 0.5*0 + 0.5*tanh(0) = 0, h_pad = 0.5*tanh(0) = 0).
    x_tm = x.reshape(B, T, D_in).transpose(1, 0, 2)                  # (T,B,D)
    x_tm = jnp.zeros((T, B_pad, D_in), jnp.float32).at[:, :B, :].set(x_tm)
    x_tm = x_tm.reshape(T * B_pad, D_in)

    # Fold TT cores to the equivalent dense input->gates matrix (exact).
    w_tt = tt_dense_weight(params)                       # (D_in, 4*units) f32
    # Recurrent weights pre-cast to bf16 (single MXU pass on the serial path).
    w_rec_bf = params['w_rec'].astype(jnp.bfloat16)      # (units, 4*units)

    # Pack the classifier head into one lane-padded array (zeros in pad
    # rows/cols keep the math exact; wrapper slices off pad outputs):
    #   rows [0, units)           : w1, cols padded 50 -> 128
    #   rows [units, units+128)   : w2, rows padded 50 -> 128, cols 11 -> 128
    #   next B_pad rows           : b1 replicated across rows
    #   next B_pad rows           : b2 replicated across rows
    w1_p = jnp.zeros((units, LANE), jnp.float32).at[:, :CLS_HIDDEN].set(params['w1'])
    w2_p = jnp.zeros((LANE, LANE), jnp.float32).at[:CLS_HIDDEN, :NUM_CLASSES].set(params['w2'])
    b1_p = jnp.zeros((B_pad, LANE), jnp.float32).at[:, :CLS_HIDDEN].set(
        jnp.broadcast_to(params['b1'], (B_pad, CLS_HIDDEN)))
    b2_p = jnp.zeros((B_pad, LANE), jnp.float32).at[:, :NUM_CLASSES].set(
        jnp.broadcast_to(params['b2'], (B_pad, NUM_CLASSES)))
    head = jnp.concatenate([w1_p, w2_p, b1_p, b2_p], axis=0)        # (208,128)

    call = build_tt_lstm_call(B_pad, T, units)
    out = call(x_tm, w_tt, w_rec_bf, head)
    return out[:B, :NUM_CLASSES]


# --------------------------- pure-JAX reference ------------------------------
def reference_forward(x, params):
    B, T = x.shape[0], x.shape[1]
    units = params['units']
    xf = x.reshape(B, T, -1)
    h = jnp.zeros((B, units), jnp.float32)
    c = jnp.zeros((B, units), jnp.float32)
    for t in range(T):
        z = tt_contract(xf[:, t, :], params) + h @ params['w_rec']
        i = jnp.clip(z[:, :units] / 6.0 + 0.5, 0.0, 1.0)
        f = jnp.clip(z[:, units:2 * units] / 6.0 + 0.5, 0.0, 1.0)
        c = f * c + i * jnp.tanh(z[:, 2 * units:3 * units])
        o = jnp.clip(z[:, 3 * units:] / 6.0 + 0.5, 0.0, 1.0)
        h = o * jnp.tanh(c)
    hid = h @ params['w1'] + params['b1']
    hid = jnp.where(hid >= 0, hid, LEAKY_SLOPE * hid)
    return hid @ params['w2'] + params['b2']


if __name__ == "__main__":
    key = jax.random.PRNGKey(0)
    kp, kx = jax.random.split(key)
    params = init_params(kp)
    x = jax.random.normal(kx, (BATCH, SEQ, C, H, W), jnp.float32)

    out = tt_lstm_forward(x, params)
    out = jax.block_until_ready(out)

    ref = reference_forward(x, params)
    assert out.shape == (BATCH, NUM_CLASSES)
    # bf16 operands on the recurrent matmul (f32 accumulation) drift slightly
    # from the pure-f32 reference; well inside this tolerance at these scales.
    np.testing.assert_allclose(np.asarray(out), np.asarray(ref),
                               atol=2e-2, rtol=2e-2)
    print("KERNEL_OK")
</pallas_src>

<mosaic_0001>
module attributes {stable_mosaic.version = 11 : i64} {
  func.func @kernel(%arg0: memref<64x64xf32, #tpu.memory_space<vmem>>, %arg1: memref<64x256xf32, #tpu.memory_space<vmem>>, %arg2: memref<64x256xbf16, #tpu.memory_space<vmem>>, %arg3: memref<208x128xf32, #tpu.memory_space<vmem>>, %arg4: memref<8x128xf32, #tpu.memory_space<vmem>>, %arg5: memref<64x256xf32, #tpu.memory_space<vmem>>) attributes {dimension_semantics = [], scalar_prefetch = 0 : i64, scratch_operands = 1 : i64, tpu.core_type = #tpu.core_type<tc>} {
    %c0 = arith.constant 0 : index
    %c0_0 = arith.constant 0 : index
    %0 = vector.load %arg0[%c0, %c0_0] : memref<64x64xf32, #tpu.memory_space<vmem>>, vector<64x64xf32>
    %c0_1 = arith.constant 0 : index
    %c0_2 = arith.constant 0 : index
    %1 = vector.load %arg1[%c0_1, %c0_2] : memref<64x256xf32, #tpu.memory_space<vmem>>, vector<64x256xf32>
    %cst = arith.constant dense<0.000000e+00> : vector<64x256xf32>
    %2 = tpu.matmul %0, %1, %cst {dimension_numbers = #tpu.dot_dimension_numbers<[1], [0], [0], [1], [0, 0, 1, 1], [], []>} : vector<64x64xf32>, vector<64x256xf32>, vector<64x256xf32> -> vector<64x256xf32>
    %c0_3 = arith.constant 0 : index
    %c0_4 = arith.constant 0 : index
    %3 = vector.load %arg5[%c0_3, %c0_4] : memref<64x256xf32, #tpu.memory_space<vmem>>, vector<64x256xf32>
    tpu.vector_store %arg5[%c0_3, %c0_4], %2 {strides = array<i32>} : memref<64x256xf32, #tpu.memory_space<vmem>>, vector<64x256xf32>,
    %cst_5 = arith.constant 0.000000e+00 : f32
    %4 = vector.broadcast %cst_5 : f32 to vector<8x64xf32>
    %cst_6 = arith.constant 0.000000e+00 : f32
    %5 = vector.broadcast %cst_6 : f32 to vector<8x64xf32>
    %c0_i32 = arith.constant 0 : i32
    %c8_i32 = arith.constant 8 : i32
    %6 = arith.muli %c0_i32, %c8_i32 : i32
    %7 = tpu.assume_multiple %6, 8 : i32
    %8 = arith.index_cast %7 : i32 to index
    %c0_7 = arith.constant 0 : index
    %9 = vector.load %arg5[%8, %c0_7] : memref<64x256xf32, #tpu.memory_space<vmem>>, vector<8x256xf32>
    %10 = arith.truncf %4 : vector<8x64xf32> to vector<8x64xbf16>
    %c0_8 = arith.constant 0 : index
    %c0_9 = arith.constant 0 : index
    %11 = vector.load %arg2[%c0_8, %c0_9] : memref<64x256xbf16, #tpu.memory_space<vmem>>, vector<64x256xbf16>
    %cst_10 = arith.constant dense<0.000000e+00> : vector<8x256xf32>
    %12 = tpu.matmul %10, %11, %cst_10 {dimension_numbers = #tpu.dot_dimension_numbers<[1], [0], [0], [1], [0, 0, 1, 1], [], []>} : vector<8x64xbf16>, vector<64x256xbf16>, vector<8x256xf32> -> vector<8x256xf32>
    %13 = arith.addf %9, %12 : vector<8x256xf32>
    %14 = vector.extract_strided_slice %13 {offsets = [0, 0], sizes = [8, 64], strides = [1, 1]} : vector<8x256xf32> to vector<8x64xf32>
    %cst_11 = arith.constant 0.166666672 : f32
    %15 = vector.broadcast %cst_11 : f32 to vector<8x64xf32>
    %16 = arith.mulf %14, %15 : vector<8x64xf32>
    %cst_12 = arith.constant 5.000000e-01 : f32
    %17 = vector.broadcast %cst_12 : f32 to vector<8x64xf32>
    %18 = arith.addf %16, %17 : vector<8x64xf32>
    %cst_13 = arith.constant 0.000000e+00 : f32
    %cst_14 = arith.constant 1.000000e+00 : f32
    %19 = vector.broadcast %cst_13 : f32 to vector<8x64xf32>
    %20 = arith.maximumf %19, %18 : vector<8x64xf32>
    %21 = vector.broadcast %cst_14 : f32 to vector<8x64xf32>
    %22 = arith.minimumf %21, %20 : vector<8x64xf32>
    %23 = vector.extract_strided_slice %13 {offsets = [0, 64], sizes = [8, 64], strides = [1, 1]} : vector<8x256xf32> to vector<8x64xf32>
    %cst_15 = arith.constant 0.166666672 : f32
    %24 = vector.broadcast %cst_15 : f32 to vector<8x64xf32>
    %25 = arith.mulf %23, %24 : vector<8x64xf32>
    %cst_16 = arith.constant 5.000000e-01 : f32
    %26 = vector.broadcast %cst_16 : f32 to vector<8x64xf32>
    %27 = arith.addf %25, %26 : vector<8x64xf32>
    %cst_17 = arith.constant 0.000000e+00 : f32
    %cst_18 = arith.constant 1.000000e+00 : f32
    %28 = vector.broadcast %cst_17 : f32 to vector<8x64xf32>
    %29 = arith.maximumf %28, %27 : vector<8x64xf32>
    %30 = vector.broadcast %cst_18 : f32 to vector<8x64xf32>
    %31 = arith.minimumf %30, %29 : vector<8x64xf32>
    %32 = vector.extract_strided_slice %13 {offsets = [0, 128], sizes = [8, 64], strides = [1, 1]} : vector<8x256xf32> to vector<8x64xf32>
    %33 = math.tanh %32 : vector<8x64xf32>
    %34 = vector.extract_strided_slice %13 {offsets = [0, 192], sizes = [8, 64], strides = [1, 1]} : vector<8x256xf32> to vector<8x64xf32>
    %cst_19 = arith.constant 0.166666672 : f32
    %35 = vector.broadcast %cst_19 : f32 to vector<8x64xf32>
    %36 = arith.mulf %34, %35 : vector<8x64xf32>
    %cst_20 = arith.constant 5.000000e-01 : f32
    %37 = vector.broadcast %cst_20 : f32 to vector<8x64xf32>
    %38 = arith.addf %36, %37 : vector<8x64xf32>
    %cst_21 = arith.constant 0.000000e+00 : f32
    %cst_22 = arith.constant 1.000000e+00 : f32
    %39 = vector.broadcast %cst_21 : f32 to vector<8x64xf32>
    %40 = arith.maximumf %39, %38 : vector<8x64xf32>
    %41 = vector.broadcast %cst_22 : f32 to vector<8x64xf32>
    %42 = arith.minimumf %41, %40 : vector<8x64xf32>
    %43 = arith.mulf %31, %5 : vector<8x64xf32>
    %44 = arith.mulf %22, %33 : vector<8x64xf32>
    %45 = arith.addf %43, %44 : vector<8x64xf32>
    %46 = math.tanh %45 : vector<8x64xf32>
    %47 = arith.mulf %42, %46 : vector<8x64xf32>
    %c1_i32 = arith.constant 1 : i32
    %c8_i32_23 = arith.constant 8 : i32
    %48 = arith.muli %c1_i32, %c8_i32_23 : i32
    %49 = tpu.assume_multiple %48, 8 : i32
    %50 = arith.index_cast %49 : i32 to index
    %c0_24 = arith.constant 0 : index
    %51 = vector.load %arg5[%50, %c0_24] : memref<64x256xf32, #tpu.memory_space<vmem>>, vector<8x256xf32>
    %52 = arith.truncf %47 : vector<8x64xf32> to vector<8x64xbf16>
    %c0_25 = arith.constant 0 : index
    %c0_26 = arith.constant 0 : index
    %53 = vector.load %arg2[%c0_25, %c0_26] : memref<64x256xbf16, #tpu.memory_space<vmem>>, vector<64x256xbf16>
    %cst_27 = arith.constant dense<0.000000e+00> : vector<8x256xf32>
    %54 = tpu.matmul %52, %53, %cst_27 {dimension_numbers = #tpu.dot_dimension_numbers<[1], [0], [0], [1], [0, 0, 1, 1], [], []>} : vector<8x64xbf16>, vector<64x256xbf16>, vector<8x256xf32> -> vector<8x256xf32>
    %55 = arith.addf %51, %54 : vector<8x256xf32>
    %56 = vector.extract_strided_slice %55 {offsets = [0, 0], sizes = [8, 64], strides = [1, 1]} : vector<8x256xf32> to vector<8x64xf32>
    %cst_28 = arith.constant 0.166666672 : f32
    %57 = vector.broadcast %cst_28 : f32 to vector<8x64xf32>
    %58 = arith.mulf %56, %57 : vector<8x64xf32>
    %cst_29 = arith.constant 5.000000e-01 : f32
    %59 = vector.broadcast %cst_29 : f32 to vector<8x64xf32>
    %60 = arith.addf %58, %59 : vector<8x64xf32>
    %cst_30 = arith.constant 0.000000e+00 : f32
    %cst_31 = arith.constant 1.000000e+00 : f32
    %61 = vector.broadcast %cst_30 : f32 to vector<8x64xf32>
    %62 = arith.maximumf %61, %60 : vector<8x64xf32>
    %63 = vector.broadcast %cst_31 : f32 to vector<8x64xf32>
    %64 = arith.minimumf %63, %62 : vector<8x64xf32>
    %65 = vector.extract_strided_slice %55 {offsets = [0, 64], sizes = [8, 64], strides = [1, 1]} : vector<8x256xf32> to vector<8x64xf32>
    %cst_32 = arith.constant 0.166666672 : f32
    %66 = vector.broadcast %cst_32 : f32 to vector<8x64xf32>
    %67 = arith.mulf %65, %66 : vector<8x64xf32>
    %cst_33 = arith.constant 5.000000e-01 : f32
    %68 = vector.broadcast %cst_33 : f32 to vector<8x64xf32>
    %69 = arith.addf %67, %68 : vector<8x64xf32>
    %cst_34 = arith.constant 0.000000e+00 : f32
    %cst_35 = arith.constant 1.000000e+00 : f32
    %70 = vector.broadcast %cst_34 : f32 to vector<8x64xf32>
    %71 = arith.maximumf %70, %69 : vector<8x64xf32>
    %72 = vector.broadcast %cst_35 : f32 to vector<8x64xf32>
    %73 = arith.minimumf %72, %71 : vector<8x64xf32>
    %74 = vector.extract_strided_slice %55 {offsets = [0, 128], sizes = [8, 64], strides = [1, 1]} : vector<8x256xf32> to vector<8x64xf32>
    %75 = math.tanh %74 : vector<8x64xf32>
    %76 = vector.extract_strided_slice %55 {offsets = [0, 192], sizes = [8, 64], strides = [1, 1]} : vector<8x256xf32> to vector<8x64xf32>
    %cst_36 = arith.constant 0.166666672 : f32
    %77 = vector.broadcast %cst_36 : f32 to vector<8x64xf32>
    %78 = arith.mulf %76, %77 : vector<8x64xf32>
    %cst_37 = arith.constant 5.000000e-01 : f32
    %79 = vector.broadcast %cst_37 : f32 to vector<8x64xf32>
    %80 = arith.addf %78, %79 : vector<8x64xf32>
    %cst_38 = arith.constant 0.000000e+00 : f32
    %cst_39 = arith.constant 1.000000e+00 : f32
    %81 = vector.broadcast %cst_38 : f32 to vector<8x64xf32>
    %82 = arith.maximumf %81, %80 : vector<8x64xf32>
    %83 = vector.broadcast %cst_39 : f32 to vector<8x64xf32>
    %84 = arith.minimumf %83, %82 : vector<8x64xf32>
    %85 = arith.mulf %73, %45 : vector<8x64xf32>
    %86 = arith.mulf %64, %75 : vector<8x64xf32>
    %87 = arith.addf %85, %86 : vector<8x64xf32>
    %88 = math.tanh %87 : vector<8x64xf32>
    %89 = arith.mulf %84, %88 : vector<8x64xf32>
    %c2_i32 = arith.constant 2 : i32
    %c8_i32_40 = arith.constant 8 : i32
    %90 = arith.muli %c2_i32, %c8_i32_40 : i32
    %91 = tpu.assume_multiple %90, 8 : i32
    %92 = arith.index_cast %91 : i32 to index
    %c0_41 = arith.constant 0 : index
    %93 = vector.load %arg5[%92, %c0_41] : memref<64x256xf32, #tpu.memory_space<vmem>>, vector<8x256xf32>
    %94 = arith.truncf %89 : vector<8x64xf32> to vector<8x64xbf16>
    %c0_42 = arith.constant 0 : index
    %c0_43 = arith.constant 0 : index
    %95 = vector.load %arg2[%c0_42, %c0_43] : memref<64x256xbf16, #tpu.memory_space<vmem>>, vector<64x256xbf16>
    %cst_44 = arith.constant dense<0.000000e+00> : vector<8x256xf32>
    %96 = tpu.matmul %94, %95, %cst_44 {dimension_numbers = #tpu.dot_dimension_numbers<[1], [0], [0], [1], [0, 0, 1, 1], [], []>} : vector<8x64xbf16>, vector<64x256xbf16>, vector<8x256xf32> -> vector<8x256xf32>
    %97 = arith.addf %93, %96 : vector<8x256xf32>
    %98 = vector.extract_strided_slice %97 {offsets = [0, 0], sizes = [8, 64], strides = [1, 1]} : vector<8x256xf32> to vector<8x64xf32>
    %cst_45 = arith.constant 0.166666672 : f32
    %99 = vector.broadcast %cst_45 : f32 to vector<8x64xf32>
    %100 = arith.mulf %98, %99 : vector<8x64xf32>
    %cst_46 = arith.constant 5.000000e-01 : f32
    %101 = vector.broadcast %cst_46 : f32 to vector<8x64xf32>
    %102 = arith.addf %100, %101 : vector<8x64xf32>
    %cst_47 = arith.constant 0.000000e+00 : f32
    %cst_48 = arith.constant 1.000000e+00 : f32
    %103 = vector.broadcast %cst_47 : f32 to vector<8x64xf32>
    %104 = arith.maximumf %103, %102 : vector<8x64xf32>
    %105 = vector.broadcast %cst_48 : f32 to vector<8x64xf32>
    %106 = arith.minimumf %105, %104 : vector<8x64xf32>
    %107 = vector.extract_strided_slice %97 {offsets = [0, 64], sizes = [8, 64], strides = [1, 1]} : vector<8x256xf32> to vector<8x64xf32>
    %cst_49 = arith.constant 0.166666672 : f32
    %108 = vector.broadcast %cst_49 : f32 to vector<8x64xf32>
    %109 = arith.mulf %107, %108 : vector<8x64xf32>
    %cst_50 = arith.constant 5.000000e-01 : f32
    %110 = vector.broadcast %cst_50 : f32 to vector<8x64xf32>
    %111 = arith.addf %109, %110 : vector<8x64xf32>
    %cst_51 = arith.constant 0.000000e+00 : f32
    %cst_52 = arith.constant 1.000000e+00 : f32
    %112 = vector.broadcast %cst_51 : f32 to vector<8x64xf32>
    %113 = arith.maximumf %112, %111 : vector<8x64xf32>
    %114 = vector.broadcast %cst_52 : f32 to vector<8x64xf32>
    %115 = arith.minimumf %114, %113 : vector<8x64xf32>
    %116 = vector.extract_strided_slice %97 {offsets = [0, 128], sizes = [8, 64], strides = [1, 1]} : vector<8x256xf32> to vector<8x64xf32>
    %117 = math.tanh %116 : vector<8x64xf32>
    %118 = vector.extract_strided_slice %97 {offsets = [0, 192], sizes = [8, 64], strides = [1, 1]} : vector<8x256xf32> to vector<8x64xf32>
    %cst_53 = arith.constant 0.166666672 : f32
    %119 = vector.broadcast %cst_53 : f32 to vector<8x64xf32>
    %120 = arith.mulf %118, %119 : vector<8x64xf32>
    %cst_54 = arith.constant 5.000000e-01 : f32
    %121 = vector.broadcast %cst_54 : f32 to vector<8x64xf32>
    %122 = arith.addf %120, %121 : vector<8x64xf32>
    %cst_55 = arith.constant 0.000000e+00 : f32
    %cst_56 = arith.constant 1.000000e+00 : f32
    %123 = vector.broadcast %cst_55 : f32 to vector<8x64xf32>
    %124 = arith.maximumf %123, %122 : vector<8x64xf32>
    %125 = vector.broadcast %cst_56 : f32 to vector<8x64xf32>
    %126 = arith.minimumf %125, %124 : vector<8x64xf32>
    %127 = arith.mulf %115, %87 : vector<8x64xf32>
    %128 = arith.mulf %106, %117 : vector<8x64xf32>
    %129 = arith.addf %127, %128 : vector<8x64xf32>
    %130 = math.tanh %129 : vector<8x64xf32>
    %131 = arith.mulf %126, %130 : vector<8x64xf32>
    %c3_i32 = arith.constant 3 : i32
    %c8_i32_57 = arith.constant 8 : i32
    %132 = arith.muli %c3_i32, %c8_i32_57 : i32
    %133 = tpu.assume_multiple %132, 8 : i32
    %134 = arith.index_cast %133 : i32 to index
    %c0_58 = arith.constant 0 : index
    %135 = vector.load %arg5[%134, %c0_58] : memref<64x256xf32, #tpu.memory_space<vmem>>, vector<8x256xf32>
    %136 = arith.truncf %131 : vector<8x64xf32> to vector<8x64xbf16>
    %c0_59 = arith.constant 0 : index
    %c0_60 = arith.constant 0 : index
    %137 = vector.load %arg2[%c0_59, %c0_60] : memref<64x256xbf16, #tpu.memory_space<vmem>>, vector<64x256xbf16>
    %cst_61 = arith.constant dense<0.000000e+00> : vector<8x256xf32>
    %138 = tpu.matmul %136, %137, %cst_61 {dimension_numbers = #tpu.dot_dimension_numbers<[1], [0], [0], [1], [0, 0, 1, 1], [], []>} : vector<8x64xbf16>, vector<64x256xbf16>, vector<8x256xf32> -> vector<8x256xf32>
    %139 = arith.addf %135, %138 : vector<8x256xf32>
    %140 = vector.extract_strided_slice %139 {offsets = [0, 0], sizes = [8, 64], strides = [1, 1]} : vector<8x256xf32> to vector<8x64xf32>
    %cst_62 = arith.constant 0.166666672 : f32
    %141 = vector.broadcast %cst_62 : f32 to vector<8x64xf32>
    %142 = arith.mulf %140, %141 : vector<8x64xf32>
    %cst_63 = arith.constant 5.000000e-01 : f32
    %143 = vector.broadcast %cst_63 : f32 to vector<8x64xf32>
    %144 = arith.addf %142, %143 : vector<8x64xf32>
    %cst_64 = arith.constant 0.000000e+00 : f32
    %cst_65 = arith.constant 1.000000e+00 : f32
    %145 = vector.broadcast %cst_64 : f32 to vector<8x64xf32>
    %146 = arith.maximumf %145, %144 : vector<8x64xf32>
    %147 = vector.broadcast %cst_65 : f32 to vector<8x64xf32>
    %148 = arith.minimumf %147, %146 : vector<8x64xf32>
    %149 = vector.extract_strided_slice %139 {offsets = [0, 64], sizes = [8, 64], strides = [1, 1]} : vector<8x256xf32> to vector<8x64xf32>
    %cst_66 = arith.constant 0.166666672 : f32
    %150 = vector.broadcast %cst_66 : f32 to vector<8x64xf32>
    %151 = arith.mulf %149, %150 : vector<8x64xf32>
    %cst_67 = arith.constant 5.000000e-01 : f32
    %152 = vector.broadcast %cst_67 : f32 to vector<8x64xf32>
    %153 = arith.addf %151, %152 : vector<8x64xf32>
    %cst_68 = arith.constant 0.000000e+00 : f32
    %cst_69 = arith.constant 1.000000e+00 : f32
    %154 = vector.broadcast %cst_68 : f32 to vector<8x64xf32>
    %155 = arith.maximumf %154, %153 : vector<8x64xf32>
    %156 = vector.broadcast %cst_69 : f32 to vector<8x64xf32>
    %157 = arith.minimumf %156, %155 : vector<8x64xf32>
    %158 = vector.extract_strided_slice %139 {offsets = [0, 128], sizes = [8, 64], strides = [1, 1]} : vector<8x256xf32> to vector<8x64xf32>
    %159 = math.tanh %158 : vector<8x64xf32>
    %160 = vector.extract_strided_slice %139 {offsets = [0, 192], sizes = [8, 64], strides = [1, 1]} : vector<8x256xf32> to vector<8x64xf32>
    %cst_70 = arith.constant 0.166666672 : f32
    %161 = vector.broadcast %cst_70 : f32 to vector<8x64xf32>
    %162 = arith.mulf %160, %161 : vector<8x64xf32>
    %cst_71 = arith.constant 5.000000e-01 : f32
    %163 = vector.broadcast %cst_71 : f32 to vector<8x64xf32>
    %164 = arith.addf %162, %163 : vector<8x64xf32>
    %cst_72 = arith.constant 0.000000e+00 : f32
    %cst_73 = arith.constant 1.000000e+00 : f32
    %165 = vector.broadcast %cst_72 : f32 to vector<8x64xf32>
    %166 = arith.maximumf %165, %164 : vector<8x64xf32>
    %167 = vector.broadcast %cst_73 : f32 to vector<8x64xf32>
    %168 = arith.minimumf %167, %166 : vector<8x64xf32>
    %169 = arith.mulf %157, %129 : vector<8x64xf32>
    %170 = arith.mulf %148, %159 : vector<8x64xf32>
    %171 = arith.addf %169, %170 : vector<8x64xf32>
    %172 = math.tanh %171 : vector<8x64xf32>
    %173 = arith.mulf %168, %172 : vector<8x64xf32>
    %c4_i32 = arith.constant 4 : i32
    %c8_i32_74 = arith.constant 8 : i32
    %174 = arith.muli %c4_i32, %c8_i32_74 : i32
    %175 = tpu.assume_multiple %174, 8 : i32
    %176 = arith.index_cast %175 : i32 to index
    %c0_75 = arith.constant 0 : index
    %177 = vector.load %arg5[%176, %c0_75] : memref<64x256xf32, #tpu.memory_space<vmem>>, vector<8x256xf32>
    %178 = arith.truncf %173 : vector<8x64xf32> to vector<8x64xbf16>
    %c0_76 = arith.constant 0 : index
    %c0_77 = arith.constant 0 : index
    %179 = vector.load %arg2[%c0_76, %c0_77] : memref<64x256xbf16, #tpu.memory_space<vmem>>, vector<64x256xbf16>
    %cst_78 = arith.constant dense<0.000000e+00> : vector<8x256xf32>
    %180 = tpu.matmul %178, %179, %cst_78 {dimension_numbers = #tpu.dot_dimension_numbers<[1], [0], [0], [1], [0, 0, 1, 1], [], []>} : vector<8x64xbf16>, vector<64x256xbf16>, vector<8x256xf32> -> vector<8x256xf32>
    %181 = arith.addf %177, %180 : vector<8x256xf32>
    %182 = vector.extract_strided_slice %181 {offsets = [0, 0], sizes = [8, 64], strides = [1, 1]} : vector<8x256xf32> to vector<8x64xf32>
    %cst_79 = arith.constant 0.166666672 : f32
    %183 = vector.broadcast %cst_79 : f32 to vector<8x64xf32>
    %184 = arith.mulf %182, %183 : vector<8x64xf32>
    %cst_80 = arith.constant 5.000000e-01 : f32
    %185 = vector.broadcast %cst_80 : f32 to vector<8x64xf32>
    %186 = arith.addf %184, %185 : vector<8x64xf32>
    %cst_81 = arith.constant 0.000000e+00 : f32
    %cst_82 = arith.constant 1.000000e+00 : f32
    %187 = vector.broadcast %cst_81 : f32 to vector<8x64xf32>
    %188 = arith.maximumf %187, %186 : vector<8x64xf32>
    %189 = vector.broadcast %cst_82 : f32 to vector<8x64xf32>
    %190 = arith.minimumf %189, %188 : vector<8x64xf32>
    %191 = vector.extract_strided_slice %181 {offsets = [0, 64], sizes = [8, 64], strides = [1, 1]} : vector<8x256xf32> to vector<8x64xf32>
    %cst_83 = arith.constant 0.166666672 : f32
    %192 = vector.broadcast %cst_83 : f32 to vector<8x64xf32>
    %193 = arith.mulf %191, %192 : vector<8x64xf32>
    %cst_84 = arith.constant 5.000000e-01 : f32
    %194 = vector.broadcast %cst_84 : f32 to vector<8x64xf32>
    %195 = arith.addf %193, %194 : vector<8x64xf32>
    %cst_85 = arith.constant 0.000000e+00 : f32
    %cst_86 = arith.constant 1.000000e+00 : f32
    %196 = vector.broadcast %cst_85 : f32 to vector<8x64xf32>
    %197 = arith.maximumf %196, %195 : vector<8x64xf32>
    %198 = vector.broadcast %cst_86 : f32 to vector<8x64xf32>
    %199 = arith.minimumf %198, %197 : vector<8x64xf32>
    %200 = vector.extract_strided_slice %181 {offsets = [0, 128], sizes = [8, 64], strides = [1, 1]} : vector<8x256xf32> to vector<8x64xf32>
    %201 = math.tanh %200 : vector<8x64xf32>
    %202 = vector.extract_strided_slice %181 {offsets = [0, 192], sizes = [8, 64], strides = [1, 1]} : vector<8x256xf32> to vector<8x64xf32>
    %cst_87 = arith.constant 0.166666672 : f32
    %203 = vector.broadcast %cst_87 : f32 to vector<8x64xf32>
    %204 = arith.mulf %202, %203 : vector<8x64xf32>
    %cst_88 = arith.constant 5.000000e-01 : f32
    %205 = vector.broadcast %cst_88 : f32 to vector<8x64xf32>
    %206 = arith.addf %204, %205 : vector<8x64xf32>
    %cst_89 = arith.constant 0.000000e+00 : f32
    %cst_90 = arith.constant 1.000000e+00 : f32
    %207 = vector.broadcast %cst_89 : f32 to vector<8x64xf32>
    %208 = arith.maximumf %207, %206 : vector<8x64xf32>
    %209 = vector.broadcast %cst_90 : f32 to vector<8x64xf32>
    %210 = arith.minimumf %209, %208 : vector<8x64xf32>
    %211 = arith.mulf %199, %171 : vector<8x64xf32>
    %212 = arith.mulf %190, %201 : vector<8x64xf32>
    %213 = arith.addf %211, %212 : vector<8x64xf32>
    %214 = math.tanh %213 : vector<8x64xf32>
    %215 = arith.mulf %210, %214 : vector<8x64xf32>
    %c5_i32 = arith.constant 5 : i32
    %c8_i32_91 = arith.constant 8 : i32
    %216 = arith.muli %c5_i32, %c8_i32_91 : i32
    %217 = tpu.assume_multiple %216, 8 : i32
    %218 = arith.index_cast %217 : i32 to index
    %c0_92 = arith.constant 0 : index
    %219 = vector.load %arg5[%218, %c0_92] : memref<64x256xf32, #tpu.memory_space<vmem>>, vector<8x256xf32>
    %220 = arith.truncf %215 : vector<8x64xf32> to vector<8x64xbf16>
    %c0_93 = arith.constant 0 : index
    %c0_94 = arith.constant 0 : index
    %221 = vector.load %arg2[%c0_93, %c0_94] : memref<64x256xbf16, #tpu.memory_space<vmem>>, vector<64x256xbf16>
    %cst_95 = arith.constant dense<0.000000e+00> : vector<8x256xf32>
    %222 = tpu.matmul %220, %221, %cst_95 {dimension_numbers = #tpu.dot_dimension_numbers<[1], [0], [0], [1], [0, 0, 1, 1], [], []>} : vector<8x64xbf16>, vector<64x256xbf16>, vector<8x256xf32> -> vector<8x256xf32>
    %223 = arith.addf %219, %222 : vector<8x256xf32>
    %224 = vector.extract_strided_slice %223 {offsets = [0, 0], sizes = [8, 64], strides = [1, 1]} : vector<8x256xf32> to vector<8x64xf32>
    %cst_96 = arith.constant 0.166666672 : f32
    %225 = vector.broadcast %cst_96 : f32 to vector<8x64xf32>
    %226 = arith.mulf %224, %225 : vector<8x64xf32>
    %cst_97 = arith.constant 5.000000e-01 : f32
    %227 = vector.broadcast %cst_97 : f32 to vector<8x64xf32>
    %228 = arith.addf %226, %227 : vector<8x64xf32>
    %cst_98 = arith.constant 0.000000e+00 : f32
    %cst_99 = arith.constant 1.000000e+00 : f32
    %229 = vector.broadcast %cst_98 : f32 to vector<8x64xf32>
    %230 = arith.maximumf %229, %228 : vector<8x64xf32>
    %231 = vector.broadcast %cst_99 : f32 to vector<8x64xf32>
    %232 = arith.minimumf %231, %230 : vector<8x64xf32>
    %233 = vector.extract_strided_slice %223 {offsets = [0, 64], sizes = [8, 64], strides = [1, 1]} : vector<8x256xf32> to vector<8x64xf32>
    %cst_100 = arith.constant 0.166666672 : f32
    %234 = vector.broadcast %cst_100 : f32 to vector<8x64xf32>
    %235 = arith.mulf %233, %234 : vector<8x64xf32>
    %cst_101 = arith.constant 5.000000e-01 : f32
    %236 = vector.broadcast %cst_101 : f32 to vector<8x64xf32>
    %237 = arith.addf %235, %236 : vector<8x64xf32>
    %cst_102 = arith.constant 0.000000e+00 : f32
    %cst_103 = arith.constant 1.000000e+00 : f32
    %238 = vector.broadcast %cst_102 : f32 to vector<8x64xf32>
    %239 = arith.maximumf %238, %237 : vector<8x64xf32>
    %240 = vector.broadcast %cst_103 : f32 to vector<8x64xf32>
    %241 = arith.minimumf %240, %239 : vector<8x64xf32>
    %242 = vector.extract_strided_slice %223 {offsets = [0, 128], sizes = [8, 64], strides = [1, 1]} : vector<8x256xf32> to vector<8x64xf32>
    %243 = math.tanh %242 : vector<8x64xf32>
    %244 = vector.extract_strided_slice %223 {offsets = [0, 192], sizes = [8, 64], strides = [1, 1]} : vector<8x256xf32> to vector<8x64xf32>
    %cst_104 = arith.constant 0.166666672 : f32
    %245 = vector.broadcast %cst_104 : f32 to vector<8x64xf32>
    %246 = arith.mulf %244, %245 : vector<8x64xf32>
    %cst_105 = arith.constant 5.000000e-01 : f32
    %247 = vector.broadcast %cst_105 : f32 to vector<8x64xf32>
    %248 = arith.addf %246, %247 : vector<8x64xf32>
    %cst_106 = arith.constant 0.000000e+00 : f32
    %cst_107 = arith.constant 1.000000e+00 : f32
    %249 = vector.broadcast %cst_106 : f32 to vector<8x64xf32>
    %250 = arith.maximumf %249, %248 : vector<8x64xf32>
    %251 = vector.broadcast %cst_107 : f32 to vector<8x64xf32>
    %252 = arith.minimumf %251, %250 : vector<8x64xf32>
    %253 = arith.mulf %241, %213 : vector<8x64xf32>
    %254 = arith.mulf %232, %243 : vector<8x64xf32>
    %255 = arith.addf %253, %254 : vector<8x64xf32>
    %256 = math.tanh %255 : vector<8x64xf32>
    %257 = arith.mulf %252, %256 : vector<8x64xf32>
    %c6_i32 = arith.constant 6 : i32
    %c8_i32_108 = arith.constant 8 : i32
    %258 = arith.muli %c6_i32, %c8_i32_108 : i32
    %259 = tpu.assume_multiple %258, 8 : i32
    %260 = arith.index_cast %259 : i32 to index
    %c0_109 = arith.constant 0 : index
    %261 = vector.load %arg5[%260, %c0_109] : memref<64x256xf32, #tpu.memory_space<vmem>>, vector<8x256xf32>
    %262 = arith.truncf %257 : vector<8x64xf32> to vector<8x64xbf16>
    %c0_110 = arith.constant 0 : index
    %c0_111 = arith.constant 0 : index
    %263 = vector.load %arg2[%c0_110, %c0_111] : memref<64x256xbf16, #tpu.memory_space<vmem>>, vector<64x256xbf16>
    %cst_112 = arith.constant dense<0.000000e+00> : vector<8x256xf32>
    %264 = tpu.matmul %262, %263, %cst_112 {dimension_numbers = #tpu.dot_dimension_numbers<[1], [0], [0], [1], [0, 0, 1, 1], [], []>} : vector<8x64xbf16>, vector<64x256xbf16>, vector<8x256xf32> -> vector<8x256xf32>
    %265 = arith.addf %261, %264 : vector<8x256xf32>
    %266 = vector.extract_strided_slice %265 {offsets = [0, 0], sizes = [8, 64], strides = [1, 1]} : vector<8x256xf32> to vector<8x64xf32>
    %cst_113 = arith.constant 0.166666672 : f32
    %267 = vector.broadcast %cst_113 : f32 to vector<8x64xf32>
    %268 = arith.mulf %266, %267 : vector<8x64xf32>
    %cst_114 = arith.constant 5.000000e-01 : f32
    %269 = vector.broadcast %cst_114 : f32 to vector<8x64xf32>
    %270 = arith.addf %268, %269 : vector<8x64xf32>
    %cst_115 = arith.constant 0.000000e+00 : f32
    %cst_116 = arith.constant 1.000000e+00 : f32
    %271 = vector.broadcast %cst_115 : f32 to vector<8x64xf32>
    %272 = arith.maximumf %271, %270 : vector<8x64xf32>
    %273 = vector.broadcast %cst_116 : f32 to vector<8x64xf32>
    %274 = arith.minimumf %273, %272 : vector<8x64xf32>
    %275 = vector.extract_strided_slice %265 {offsets = [0, 64], sizes = [8, 64], strides = [1, 1]} : vector<8x256xf32> to vector<8x64xf32>
    %cst_117 = arith.constant 0.166666672 : f32
    %276 = vector.broadcast %cst_117 : f32 to vector<8x64xf32>
    %277 = arith.mulf %275, %276 : vector<8x64xf32>
    %cst_118 = arith.constant 5.000000e-01 : f32
    %278 = vector.broadcast %cst_118 : f32 to vector<8x64xf32>
    %279 = arith.addf %277, %278 : vector<8x64xf32>
    %cst_119 = arith.constant 0.000000e+00 : f32
    %cst_120 = arith.constant 1.000000e+00 : f32
    %280 = vector.broadcast %cst_119 : f32 to vector<8x64xf32>
    %281 = arith.maximumf %280, %279 : vector<8x64xf32>
    %282 = vector.broadcast %cst_120 : f32 to vector<8x64xf32>
    %283 = arith.minimumf %282, %281 : vector<8x64xf32>
    %284 = vector.extract_strided_slice %265 {offsets = [0, 128], sizes = [8, 64], strides = [1, 1]} : vector<8x256xf32> to vector<8x64xf32>
    %285 = math.tanh %284 : vector<8x64xf32>
    %286 = vector.extract_strided_slice %265 {offsets = [0, 192], sizes = [8, 64], strides = [1, 1]} : vector<8x256xf32> to vector<8x64xf32>
    %cst_121 = arith.constant 0.166666672 : f32
    %287 = vector.broadcast %cst_121 : f32 to vector<8x64xf32>
    %288 = arith.mulf %286, %287 : vector<8x64xf32>
    %cst_122 = arith.constant 5.000000e-01 : f32
    %289 = vector.broadcast %cst_122 : f32 to vector<8x64xf32>
    %290 = arith.addf %288, %289 : vector<8x64xf32>
    %cst_123 = arith.constant 0.000000e+00 : f32
    %cst_124 = arith.constant 1.000000e+00 : f32
    %291 = vector.broadcast %cst_123 : f32 to vector<8x64xf32>
    %292 = arith.maximumf %291, %290 : vector<8x64xf32>
    %293 = vector.broadcast %cst_124 : f32 to vector<8x64xf32>
    %294 = arith.minimumf %293, %292 : vector<8x64xf32>
    %295 = arith.mulf %283, %255 : vector<8x64xf32>
    %296 = arith.mulf %274, %285 : vector<8x64xf32>
    %297 = arith.addf %295, %296 : vector<8x64xf32>
    %298 = math.tanh %297 : vector<8x64xf32>
    %299 = arith.mulf %294, %298 : vector<8x64xf32>
    %c7_i32 = arith.constant 7 : i32
    %c8_i32_125 = arith.constant 8 : i32
    %300 = arith.muli %c7_i32, %c8_i32_125 : i32
    %301 = tpu.assume_multiple %300, 8 : i32
    %302 = arith.index_cast %301 : i32 to index
    %c0_126 = arith.constant 0 : index
    %303 = vector.load %arg5[%302, %c0_126] : memref<64x256xf32, #tpu.memory_space<vmem>>, vector<8x256xf32>
    %304 = arith.truncf %299 : vector<8x64xf32> to vector<8x64xbf16>
    %c0_127 = arith.constant 0 : index
    %c0_128 = arith.constant 0 : index
    %305 = vector.load %arg2[%c0_127, %c0_128] : memref<64x256xbf16, #tpu.memory_space<vmem>>, vector<64x256xbf16>
    %cst_129 = arith.constant dense<0.000000e+00> : vector<8x256xf32>
    %306 = tpu.matmul %304, %305, %cst_129 {dimension_numbers = #tpu.dot_dimension_numbers<[1], [0], [0], [1], [0, 0, 1, 1], [], []>} : vector<8x64xbf16>, vector<64x256xbf16>, vector<8x256xf32> -> vector<8x256xf32>
    %307 = arith.addf %303, %306 : vector<8x256xf32>
    %308 = vector.extract_strided_slice %307 {offsets = [0, 0], sizes = [8, 64], strides = [1, 1]} : vector<8x256xf32> to vector<8x64xf32>
    %cst_130 = arith.constant 0.166666672 : f32
    %309 = vector.broadcast %cst_130 : f32 to vector<8x64xf32>
    %310 = arith.mulf %308, %309 : vector<8x64xf32>
    %cst_131 = arith.constant 5.000000e-01 : f32
    %311 = vector.broadcast %cst_131 : f32 to vector<8x64xf32>
    %312 = arith.addf %310, %311 : vector<8x64xf32>
    %cst_132 = arith.constant 0.000000e+00 : f32
    %cst_133 = arith.constant 1.000000e+00 : f32
    %313 = vector.broadcast %cst_132 : f32 to vector<8x64xf32>
    %314 = arith.maximumf %313, %312 : vector<8x64xf32>
    %315 = vector.broadcast %cst_133 : f32 to vector<8x64xf32>
    %316 = arith.minimumf %315, %314 : vector<8x64xf32>
    %317 = vector.extract_strided_slice %307 {offsets = [0, 64], sizes = [8, 64], strides = [1, 1]} : vector<8x256xf32> to vector<8x64xf32>
    %cst_134 = arith.constant 0.166666672 : f32
    %318 = vector.broadcast %cst_134 : f32 to vector<8x64xf32>
    %319 = arith.mulf %317, %318 : vector<8x64xf32>
    %cst_135 = arith.constant 5.000000e-01 : f32
    %320 = vector.broadcast %cst_135 : f32 to vector<8x64xf32>
    %321 = arith.addf %319, %320 : vector<8x64xf32>
    %cst_136 = arith.constant 0.000000e+00 : f32
    %cst_137 = arith.constant 1.000000e+00 : f32
    %322 = vector.broadcast %cst_136 : f32 to vector<8x64xf32>
    %323 = arith.maximumf %322, %321 : vector<8x64xf32>
    %324 = vector.broadcast %cst_137 : f32 to vector<8x64xf32>
    %325 = arith.minimumf %324, %323 : vector<8x64xf32>
    %326 = vector.extract_strided_slice %307 {offsets = [0, 128], sizes = [8, 64], strides = [1, 1]} : vector<8x256xf32> to vector<8x64xf32>
    %327 = math.tanh %326 : vector<8x64xf32>
    %328 = vector.extract_strided_slice %307 {offsets = [0, 192], sizes = [8, 64], strides = [1, 1]} : vector<8x256xf32> to vector<8x64xf32>
    %cst_138 = arith.constant 0.166666672 : f32
    %329 = vector.broadcast %cst_138 : f32 to vector<8x64xf32>
    %330 = arith.mulf %328, %329 : vector<8x64xf32>
    %cst_139 = arith.constant 5.000000e-01 : f32
    %331 = vector.broadcast %cst_139 : f32 to vector<8x64xf32>
    %332 = arith.addf %330, %331 : vector<8x64xf32>
    %cst_140 = arith.constant 0.000000e+00 : f32
    %cst_141 = arith.constant 1.000000e+00 : f32
    %333 = vector.broadcast %cst_140 : f32 to vector<8x64xf32>
    %334 = arith.maximumf %333, %332 : vector<8x64xf32>
    %335 = vector.broadcast %cst_141 : f32 to vector<8x64xf32>
    %336 = arith.minimumf %335, %334 : vector<8x64xf32>
    %337 = arith.mulf %325, %297 : vector<8x64xf32>
    %338 = arith.mulf %316, %327 : vector<8x64xf32>
    %339 = arith.addf %337, %338 : vector<8x64xf32>
    %340 = math.tanh %339 : vector<8x64xf32>
    %341 = arith.mulf %336, %340 : vector<8x64xf32>
    %c8_i32_142 = arith.constant 8 : i32
    %c0_143 = arith.constant 0 : index
    %c0_144 = arith.constant 0 : index
    %342 = vector.load %arg3[%c0_143, %c0_144] : memref<208x128xf32, #tpu.memory_space<vmem>>, vector<64x128xf32>
    %c64 = arith.constant 64 : index
    %c0_145 = arith.constant 0 : index
    %343 = vector.load %arg3[%c64, %c0_145] : memref<208x128xf32, #tpu.memory_space<vmem>>, vector<128x128xf32>
    %c192 = arith.constant 192 : index
    %c0_146 = arith.constant 0 : index
    %344 = vector.load %arg3[%c192, %c0_146] : memref<208x128xf32, #tpu.memory_space<vmem>>, vector<8x128xf32>
    %c200 = arith.constant 200 : index
    %c0_147 = arith.constant 0 : index
    %345 = vector.load %arg3[%c200, %c0_147] : memref<208x128xf32, #tpu.memory_space<vmem>>, vector<8x128xf32>
    %cst_148 = arith.constant dense<0.000000e+00> : vector<8x128xf32>
    %346 = tpu.matmul %341, %342, %cst_148 {dimension_numbers = #tpu.dot_dimension_numbers<[1], [0], [0], [1], [0, 0, 1, 1], [], []>} : vector<8x64xf32>, vector<64x128xf32>, vector<8x128xf32> -> vector<8x128xf32>
    %347 = arith.addf %346, %344 : vector<8x128xf32>
    %cst_149 = arith.constant 0.000000e+00 : f32
    %348 = vector.broadcast %cst_149 : f32 to vector<8x128xf32>
    %349 = arith.cmpf oge, %347, %348 : vector<8x128xf32>
    %cst_150 = arith.constant 0.00999999977 : f32
    %350 = vector.broadcast %cst_150 : f32 to vector<8x128xf32>
    %351 = arith.mulf %350, %347 : vector<8x128xf32>
    %352 = arith.select %349, %347, %351 : vector<8x128xi1>, vector<8x128xf32>
    %cst_151 = arith.constant dense<0.000000e+00> : vector<8x128xf32>
    %353 = tpu.matmul %352, %343, %cst_151 {dimension_numbers = #tpu.dot_dimension_numbers<[1], [0], [0], [1], [0, 0, 1, 1], [], []>} : vector<8x128xf32>, vector<128x128xf32>, vector<8x128xf32> -> vector<8x128xf32>
    %354 = arith.addf %353, %345 : vector<8x128xf32>
    %c0_152 = arith.constant 0 : index
    %c0_153 = arith.constant 0 : index
    %355 = vector.load %arg4[%c0_152, %c0_153] : memref<8x128xf32, #tpu.memory_space<vmem>>, vector<8x128xf32>
    tpu.vector_store %arg4[%c0_152, %c0_153], %354 {strides = array<i32>} : memref<8x128xf32, #tpu.memory_space<vmem>>, vector<8x128xf32>,
    return
  }
}

</mosaic_0001>

<llo_original>
// kernel: tpu_custom_call.1
$region0: #{tpu_custom_call.1}
  #allocation0 [shape = 'u32[]', space=smem, size = 0x4, offset = 0x4, fixed_abs, tag = 'smem constant byte address 0x4 - core index']
  #allocation1 [shape = 'u32[72,128]{1,0:T(1,128)}', space=vmem, size = 0x9000, scoped, tag = 'internal scratch']
  #allocation2 [shape = 'f32[64,256]{1,0:T(8,128)}', space=vmem, size = 0x10000, scoped, tag = 'scratch operand']
  %s0 = inlined_call_operand.hbm [shape: f32[64,64], index: 0, kind: input, shape index: {}]
  %s1 = inlined_call_operand.hbm [shape: f32[64,256], index: 1, kind: input, shape index: {}]
  %s2 = inlined_call_operand.hbm [shape: bf16[64,256], index: 2, kind: input, shape index: {}]
  %s3 = inlined_call_operand.hbm [shape: f32[208,128], index: 3, kind: input, shape index: {}]
  %s4 = inlined_call_operand.hbm [shape: f32[8,128], index: 4, kind: output, shape index: {}]
  %s5 = sld [smem:[#allocation0]]
  $region42: #{tpu_custom_call.1} parent=0
    _
  %s7 = ssub.s32 1, %s5
  %s8 = scalar_select 0, %s7, %s5
  $region1: #{tpu_custom_call.1} parent=0
    #allocation3 [shape = 'u8[32768]{0}', space=vmem, size = 0x8000, scoped, tag = 'input window, operand 0, single buffered']
    #allocation4 [shape = 's32[1]{0}', space=sflag, size = 0x4, scoped, tag = 'scoped memory for tpu_custom_call.1']
    #allocation5 [shape = 's32[1]{0}', space=sflag, size = 0x4, scoped, tag = 'scoped memory for tpu_custom_call.1']
    #allocation6 [shape = 'u8[65536]{0}', space=vmem, size = 0x10000, scoped, tag = 'input window, operand 1, single buffered']
    #allocation7 [shape = 's32[1]{0}', space=sflag, size = 0x4, scoped, tag = 'scoped memory for tpu_custom_call.1']
    #allocation8 [shape = 'u8[32768]{0}', space=vmem, size = 0x8000, scoped, tag = 'input window, operand 2, single buffered']
    #allocation9 [shape = 'u8[106496]{0}', space=vmem, size = 0x1a000, scoped, tag = 'input window, operand 3, single buffered']
    #allocation10 [shape = 's32[1]{0}', space=sflag, size = 0x4, scoped, tag = 'scoped memory for tpu_custom_call.1']
    #allocation11 [shape = 'u8[4096]{0}', space=vmem, size = 0x1000, scoped, tag = 'output window, operand 0, single buffered']
    %9 = vsyncpa [#allocation4], 0
    %10 = vsyncpa [#allocation7], 0
    %11 = vsyncpa [#allocation10], 0
    %12 = vsyncpa [#allocation5], 0
    // Predicated region
    $region2: #{tpu_custom_call.1} parent=1 // pred_check
      _
    $region3: #{tpu_custom_call.1} parent=1 // pred_check_branch
      %14 = sbr.rel (0) target = $region5
    $region4: #{tpu_custom_call.1} parent=1 // pred_region
      %16 = vsyncadd [#allocation4], 0
      %s17 = sshll.u32 %s0, 4
      %s18 = int_to_ptr.hbm [resolvable:$true] %s17
      %s19 = sshll.u32 [#allocation3], 4
      %s20 = int_to_ptr.vmem [resolvable:$true] %s19
      %25 = dma.hbm_to_vmem [thread:$0]  %s18, 1024, %s20, [#allocation4], 128, 128, 8
    $region5: #{tpu_custom_call.1} parent=1 // pred_fallthru
      _
    // Predicated region
    $region6: #{tpu_custom_call.1} parent=1 // pred_check
      _
    $region7: #{tpu_custom_call.1} parent=1 // pred_check_branch
      %27 = sbr.rel (0) target = $region9
    $region8: #{tpu_custom_call.1} parent=1 // pred_region
      %29 = vsyncadd [#allocation7], 0
      %s30 = sshll.u32 %s1, 4
      %s31 = int_to_ptr.hbm [resolvable:$true] %s30
      %s32 = sshll.u32 [#allocation6], 4
      %s33 = int_to_ptr.vmem [resolvable:$true] %s32
      %38 = dma.hbm_to_vmem [thread:$0]  %s31, 2048, %s33, [#allocation7], 256, 256, 16
    $region9: #{tpu_custom_call.1} parent=1 // pred_fallthru
      _
    // Predicated region
    $region10: #{tpu_custom_call.1} parent=1 // pred_check
      _
    $region11: #{tpu_custom_call.1} parent=1 // pred_check_branch
      %40 = sbr.rel (0) target = $region13
    $region12: #{tpu_custom_call.1} parent=1 // pred_region
      %42 = vsyncadd [#allocation7], 0
      %s43 = sshll.u32 %s2, 4
      %s44 = int_to_ptr.hbm [resolvable:$true] %s43
      %s45 = sshll.u32 [#allocation8], 4
      %s46 = int_to_ptr.vmem [resolvable:$true] %s45
      %51 = dma.hbm_to_vmem [thread:$0]  %s44, 1024, %s46, [#allocation7], 128, 128, 8
    $region13: #{tpu_custom_call.1} parent=1 // pred_fallthru
      _
    // Predicated region
    $region14: #{tpu_custom_call.1} parent=1 // pred_check
      _
    $region15: #{tpu_custom_call.1} parent=1 // pred_check_branch
      %53 = sbr.rel (0) target = $region17
    $region16: #{tpu_custom_call.1} parent=1 // pred_region
      %55 = vsyncadd [#allocation10], 0
      %s56 = sshll.u32 %s3, 4
      %s57 = int_to_ptr.hbm [resolvable:$true] %s56
      %s58 = sshll.u32 [#allocation9], 4
      %s59 = int_to_ptr.vmem [resolvable:$true] %s58
      %64 = dma.hbm_to_vmem [thread:$0]  %s57, 3328, %s59, [#allocation10], 128, 128, 8
    $region17: #{tpu_custom_call.1} parent=1 // pred_fallthru
      _
    // Predicated region
    $region18: #{tpu_custom_call.1} parent=1 // pred_check
      _
    $region19: #{tpu_custom_call.1} parent=1 // pred_check_branch
      %66 = sbr.rel (0) target = $region21
    $region20: #{tpu_custom_call.1} parent=1 // pred_region
      %68 = dma.done [#allocation4], 1024
    $region21: #{tpu_custom_call.1} parent=1 // pred_fallthru
      _
    // Predicated region
    $region22: #{tpu_custom_call.1} parent=1 // pred_check
      _
    $region23: #{tpu_custom_call.1} parent=1 // pred_check_branch
      %70 = sbr.rel (0) target = $region25
    $region24: #{tpu_custom_call.1} parent=1 // pred_region
      %72 = dma.done [#allocation7], 2048
    $region25: #{tpu_custom_call.1} parent=1 // pred_fallthru
      _
    // Predicated region
    $region26: #{tpu_custom_call.1} parent=1 // pred_check
      _
    $region27: #{tpu_custom_call.1} parent=1 // pred_check_branch
      %74 = sbr.rel (0) target = $region29
    $region28: #{tpu_custom_call.1} parent=1 // pred_region
      %76 = dma.done [#allocation7], 1024
    $region29: #{tpu_custom_call.1} parent=1 // pred_fallthru
      _
    // Predicated region
    $region30: #{tpu_custom_call.1} parent=1 // pred_check
      _
    $region31: #{tpu_custom_call.1} parent=1 // pred_check_branch
      %78 = sbr.rel (0) target = $region33
    $region32: #{tpu_custom_call.1} parent=1 // pred_region
      %80 = dma.done [#allocation10], 3328
    $region33: #{tpu_custom_call.1} parent=1 // pred_fallthru
      _
    %v82 = vld [vmem:[#allocation3] sm:$0xff]
    %v83 = vld [vmem:[#allocation3 + $0x8] sm:$0xff]
    %v84 = vld [vmem:[#allocation3 + $0x10] sm:$0xff]
    %v85 = vld [vmem:[#allocation3 + $0x18] sm:$0xff]
    %v86 = vld [vmem:[#allocation3 + $0x20] sm:$0xff]
    %v87 = vld [vmem:[#allocation3 + $0x28] sm:$0xff]
    %v88 = vld [vmem:[#allocation3 + $0x30] sm:$0xff]
    %v89 = vld [vmem:[#allocation3 + $0x38] sm:$0xff]
    %v90 = vld [vmem:[#allocation6] sm:$0xff]
    %v91 = vld [vmem:[#allocation6 + $0x8] sm:$0xff]
    %v92 = vld [vmem:[#allocation6 + $0x10] sm:$0xff]
    %v93 = vld [vmem:[#allocation6 + $0x18] sm:$0xff]
    %v94 = vld [vmem:[#allocation6 + $0x20] sm:$0xff]
    %v95 = vld [vmem:[#allocation6 + $0x28] sm:$0xff]
    %v96 = vld [vmem:[#allocation6 + $0x30] sm:$0xff]
    %v97 = vld [vmem:[#allocation6 + $0x38] sm:$0xff]
    %v98 = vld [vmem:[#allocation6 + $0x40] sm:$0xff]
    %v99 = vld [vmem:[#allocation6 + $0x48] sm:$0xff]
    %v100 = vld [vmem:[#allocation6 + $0x50] sm:$0xff]
    %v101 = vld [vmem:[#allocation6 + $0x58] sm:$0xff]
    %v102 = vld [vmem:[#allocation6 + $0x60] sm:$0xff]
    %v103 = vld [vmem:[#allocation6 + $0x68] sm:$0xff]
    %v104 = vld [vmem:[#allocation6 + $0x70] sm:$0xff]
    %v105 = vld [vmem:[#allocation6 + $0x78] sm:$0xff]
    %vm106 = vcmask 523264
    %v108 = vsel %vm106, %v82, 0
    %v111 = vsel %vm106, %v83, 0
    %v114 = vsel %vm106, %v84, 0
    %v117 = vsel %vm106, %v85, 0
    %v120 = vsel %vm106, %v86, 0
    %v123 = vsel %vm106, %v87, 0
    %v126 = vsel %vm106, %v88, 0
    %v129 = vsel %vm106, %v89, 0
    %131 = vmatpush.msra.mxu0 0.0
    %132 = vmatpush.msra.mxu0 0.0
    %133 = vmatpush.msra.mxu0 0.0
    %134 = vmatpush.msra.mxu0 0.0
    %135 = vmatpush.msra.mxu0 0.0
    %136 = vmatpush.msra.mxu0 0.0
    %137 = vmatpush.msra.mxu0 0.0
    %138 = vmatpush.msra.mxu0 0.0
    %139 = vmatpush.msra.mxu0 %v104
    %140 = vmatpush.msra.mxu0 %v102
    %141 = vmatpush.msra.mxu0 %v100
    %142 = vmatpush.msra.mxu0 %v98
    %143 = vmatpush.msra.mxu0 %v96
    %144 = vmatpush.msra.mxu0 %v94
    %145 = vmatpush.msra.mxu0 %v92
    %146 = vmatpush.msra.mxu0 %v90
    %147 = vmatmul.f32.gmra.mxu0 %v108
    %v148 = vpop.f32.mrf.mxu0
    %v149 = vadd.f32 0.0, %v148
    %150 = vmatmul.f32.gmra.mxu0 %v111
    %v151 = vpop.f32.mrf.mxu0
    %v152 = vadd.f32 0.0, %v151
    %153 = vmatmul.f32.gmra.mxu0 %v114
    %v154 = vpop.f32.mrf.mxu0
    %v155 = vadd.f32 0.0, %v154
    %156 = vmatmul.f32.gmra.mxu0 %v117
    %v157 = vpop.f32.mrf.mxu0
    %v158 = vadd.f32 0.0, %v157
    %159 = vmatmul.f32.gmra.mxu0 %v120
    %v160 = vpop.f32.mrf.mxu0
    %v161 = vadd.f32 0.0, %v160
    %162 = vmatmul.f32.gmra.mxu0 %v123
    %v163 = vpop.f32.mrf.mxu0
    %v164 = vadd.f32 0.0, %v163
    %165 = vmatmul.f32.gmra.mxu0 %v126
    %v166 = vpop.f32.mrf.mxu0
    %v167 = vadd.f32 0.0, %v166
    %168 = vmatmul.f32.gmra.mxu0 %v129
    %v169 = vpop.f32.mrf.mxu0
    %v170 = vadd.f32 0.0, %v169
    %171 = vdwg.mxu0
    %172 = vmatpush.msra.mxu0 0.0
    %173 = vmatpush.msra.mxu0 0.0
    %174 = vmatpush.msra.mxu0 0.0
    %175 = vmatpush.msra.mxu0 0.0
    %176 = vmatpush.msra.mxu0 0.0
    %177 = vmatpush.msra.mxu0 0.0
    %178 = vmatpush.msra.mxu0 0.0
    %179 = vmatpush.msra.mxu0 0.0
    %180 = vmatpush.msra.mxu0 %v105
    %181 = vmatpush.msra.mxu0 %v103
    %182 = vmatpush.msra.mxu0 %v101
    %183 = vmatpush.msra.mxu0 %v99
    %184 = vmatpush.msra.mxu0 %v97
    %185 = vmatpush.msra.mxu0 %v95
    %186 = vmatpush.msra.mxu0 %v93
    %187 = vmatpush.msra.mxu0 %v91
    %188 = vmatmul.f32.gmra.mxu0 %v108
    %v189 = vpop.f32.mrf.mxu0
    %v190 = vadd.f32 0.0, %v189
    %191 = vmatmul.f32.gmra.mxu0 %v111
    %v192 = vpop.f32.mrf.mxu0
    %v193 = vadd.f32 0.0, %v192
    %194 = vmatmul.f32.gmra.mxu0 %v114
    %v195 = vpop.f32.mrf.mxu0
    %v196 = vadd.f32 0.0, %v195
    %197 = vmatmul.f32.gmra.mxu0 %v117
    %v198 = vpop.f32.mrf.mxu0
    %v199 = vadd.f32 0.0, %v198
    %200 = vmatmul.f32.gmra.mxu0 %v120
    %v201 = vpop.f32.mrf.mxu0
    %v202 = vadd.f32 0.0, %v201
    %203 = vmatmul.f32.gmra.mxu0 %v123
    %v204 = vpop.f32.mrf.mxu0
    %v205 = vadd.f32 0.0, %v204
    %206 = vmatmul.f32.gmra.mxu0 %v126
    %v207 = vpop.f32.mrf.mxu0
    %v208 = vadd.f32 0.0, %v207
    %209 = vmatmul.f32.gmra.mxu0 %v129
    %v210 = vpop.f32.mrf.mxu0
    %v211 = vadd.f32 0.0, %v210
    %212 = vdwg.mxu0
    %213 = vst [vmem:[#allocation2] sm:$0xff] %v149
    %214 = vst [vmem:[#allocation2 + $0x8] sm:$0xff] %v190
    %215 = vst [vmem:[#allocation2 + $0x10] sm:$0xff] %v152
    %216 = vst [vmem:[#allocation2 + $0x18] sm:$0xff] %v193
    %217 = vst [vmem:[#allocation2 + $0x20] sm:$0xff] %v155
    %218 = vst [vmem:[#allocation2 + $0x28] sm:$0xff] %v196
    %219 = vst [vmem:[#allocation2 + $0x30] sm:$0xff] %v158
    %220 = vst [vmem:[#allocation2 + $0x38] sm:$0xff] %v199
    %221 = vst [vmem:[#allocation2 + $0x40] sm:$0xff] %v161
    %222 = vst [vmem:[#allocation2 + $0x48] sm:$0xff] %v202
    %223 = vst [vmem:[#allocation2 + $0x50] sm:$0xff] %v164
    %224 = vst [vmem:[#allocation2 + $0x58] sm:$0xff] %v205
    %225 = vst [vmem:[#allocation2 + $0x60] sm:$0xff] %v167
    %226 = vst [vmem:[#allocation2 + $0x68] sm:$0xff] %v208
    %227 = vst [vmem:[#allocation2 + $0x70] sm:$0xff] %v170
    %228 = vst [vmem:[#allocation2 + $0x78] sm:$0xff] %v211
    %s229 = smul.u32 0, 2
    %s230 = smul.addr %s229, 8
    %s231 = scalar_lea.vmem [#allocation2], %s230
    %v232 = vld [vmem:[%s231] sm:$0xff]
    %v233 = vld [vmem:[%s231 + $0x8] sm:$0xff]
    %v234 = vld [vmem:[#allocation8] sm:$0xff]
    %v235 = vld [vmem:[#allocation8 + $0x8] sm:$0xff]
    %v236 = vld [vmem:[#allocation8 + $0x10] sm:$0xff]
    %v237 = vld [vmem:[#allocation8 + $0x18] sm:$0xff]
    %v238 = vld [vmem:[#allocation8 + $0x20] sm:$0xff]
    %v239 = vld [vmem:[#allocation8 + $0x28] sm:$0xff]
    %v240 = vld [vmem:[#allocation8 + $0x30] sm:$0xff]
    %v241 = vld [vmem:[#allocation8 + $0x38] sm:$0xff]
    %v250 = vunpack.c.l.b16 %v234
    %v251 = vunpack.c.h.b16 %v234
    %v252 = vunpack.c.l.b16 %v235
    %v253 = vunpack.c.h.b16 %v235
    %v254 = vunpack.c.l.b16 %v236
    %v255 = vunpack.c.h.b16 %v236
    %v256 = vunpack.c.l.b16 %v237
    %v257 = vunpack.c.h.b16 %v237
    %v258 = vunpack.c.l.b16 %v238
    %v259 = vunpack.c.h.b16 %v238
    %v260 = vunpack.c.l.b16 %v239
    %v261 = vunpack.c.h.b16 %v239
    %v262 = vunpack.c.l.b16 %v240
    %v263 = vunpack.c.h.b16 %v240
    %v264 = vunpack.c.l.b16 %v241
    %v265 = vunpack.c.h.b16 %v241
    %v266 = vpack.c.b16 %v252, %v250
    %v267 = vpack.c.b16 %v253, %v251
    %v268 = vpack.c.b16 %v256, %v254
    %v269 = vpack.c.b16 %v257, %v255
    %v270 = vpack.c.b16 %v260, %v258
    %v271 = vpack.c.b16 %v261, %v259
    %v272 = vpack.c.b16 %v264, %v262
    %v273 = vpack.c.b16 %v265, %v263
    %v283 = vsel %vm106, 0, 0
    %285 = vmatpush.bf16.msra.mxu0 0
    %286 = vmatpush.bf16.msra.mxu0 0
    %287 = vmatpush.bf16.msra.mxu0 0
    %288 = vmatpush.bf16.msra.mxu0 0
    %289 = vmatpush.bf16.msra.mxu0 %v272
    %290 = vmatpush.bf16.msra.mxu0 %v270
    %291 = vmatpush.bf16.msra.mxu0 %v268
    %292 = vmatpush.bf16.msra.mxu0 %v266
    %293 = vmatmul.bf16.gmra.mxu0 %v283
    %v294 = vpop.f32.mrf.mxu0
    %v295 = vadd.f32 0.0, %v294
    %v296 = vpop.f32.mrf.mxu0
    %297 = vdwg.mxu0
    %298 = vmatpush.bf16.msra.mxu0 0
    %299 = vmatpush.bf16.msra.mxu0 0
    %300 = vmatpush.bf16.msra.mxu0 0
    %301 = vmatpush.bf16.msra.mxu0 0
    %302 = vmatpush.bf16.msra.mxu0 %v273
    %303 = vmatpush.bf16.msra.mxu0 %v271
    %304 = vmatpush.bf16.msra.mxu0 %v269
    %305 = vmatpush.bf16.msra.mxu0 %v267
    %306 = vmatmul.bf16.gmra.mxu0 %v283
    %v307 = vpop.f32.mrf.mxu0
    %v308 = vadd.f32 0.0, %v307
    %v309 = vpop.f32.mrf.mxu0
    %310 = vdwg.mxu0
    %v311 = vadd.f32 %v232, %v295
    %v312 = vadd.f32 %v233, %v308
    %v313 = vmul.f32 %v311, 0.16666667
    %v314 = vadd.f32 %v313, 0.5
    %v315 = vmax.f32 %v314, 0.0
    %v316 = vmin.f32 %v315, 1.0
    %v317 = vtanh.pop %v312
    %v318 = vmul.f32 %v312, 0.16666667
    %v319 = vadd.f32 %v318, 0.5
    %v320 = vmax.f32 %v319, 0.0
    %v321 = vmin.f32 %v320, 1.0
    %v322 = vmul.f32 %v316, 0.0
    %v323 = vmul.f32 %v316, %v317
    %325 = vrot.lane.b32.xlu0 %v323, 64
    %v326 = vpop.permute.xlu0 %325
    %v328 = vadd.f32 %v322, %v326
    %v329 = vtanh.pop %v328
    %v330 = vmul.f32 %v321, %v329
    %s331 = smul.u32 1, 2
    %s332 = smul.addr %s331, 8
    %s333 = scalar_lea.vmem [#allocation2], %s332
    %v334 = vld [vmem:[%s333] sm:$0xff]
    %v335 = vld [vmem:[%s333 + $0x8] sm:$0xff]
    %v336 = vpack.c.bf16 %v330, %v330
    %338 = vrot.lane.b32.xlu0 %v336, 64
    %v339 = vpop.permute.xlu0 %338
    %v341 = vsel %vm106, %v339, 0
    %343 = vmatpush.bf16.msra.mxu0 0
    %344 = vmatpush.bf16.msra.mxu0 0
    %345 = vmatpush.bf16.msra.mxu0 0
    %346 = vmatpush.bf16.msra.mxu0 0
    %347 = vmatpush.bf16.msra.mxu0 %v272
    %348 = vmatpush.bf16.msra.mxu0 %v270
    %349 = vmatpush.bf16.msra.mxu0 %v268
    %350 = vmatpush.bf16.msra.mxu0 %v266
    %351 = vmatmul.bf16.gmra.mxu0 %v341
    %v352 = vpop.f32.mrf.mxu0
    %v353 = vadd.f32 0.0, %v352
    %v354 = vpop.f32.mrf.mxu0
    %355 = vdwg.mxu0
    %356 = vmatpush.bf16.msra.mxu0 0
    %357 = vmatpush.bf16.msra.mxu0 0
    %358 = vmatpush.bf16.msra.mxu0 0
    %359 = vmatpush.bf16.msra.mxu0 0
    %360 = vmatpush.bf16.msra.mxu0 %v273
    %361 = vmatpush.bf16.msra.mxu0 %v271
    %362 = vmatpush.bf16.msra.mxu0 %v269
    %363 = vmatpush.bf16.msra.mxu0 %v267
    %364 = vmatmul.bf16.gmra.mxu0 %v341
    %v365 = vpop.f32.mrf.mxu0
    %v366 = vadd.f32 0.0, %v365
    %v367 = vpop.f32.mrf.mxu0
    %368 = vdwg.mxu0
    %v369 = vadd.f32 %v334, %v353
    %v370 = vadd.f32 %v335, %v366
    %v371 = vmul.f32 %v369, 0.16666667
    %v372 = vadd.f32 %v371, 0.5
    %v373 = vmax.f32 %v372, 0.0
    %v374 = vmin.f32 %v373, 1.0
    %v375 = vtanh.pop %v370
    %v376 = vmul.f32 %v370, 0.16666667
    %v377 = vadd.f32 %v376, 0.5
    %v378 = vmax.f32 %v377, 0.0
    %v379 = vmin.f32 %v378, 1.0
    %v380 = vmul.f32 %v374, %v328
    %v381 = vmul.f32 %v374, %v375
    %383 = vrot.lane.b32.xlu0 %v381, 64
    %v384 = vpop.permute.xlu0 %383
    %v386 = vadd.f32 %v380, %v384
    %v387 = vtanh.pop %v386
    %v388 = vmul.f32 %v379, %v387
    %s389 = smul.u32 2, 2
    %s390 = smul.addr %s389, 8
    %s391 = scalar_lea.vmem [#allocation2], %s390
    %v392 = vld [vmem:[%s391] sm:$0xff]
    %v393 = vld [vmem:[%s391 + $0x8] sm:$0xff]
    %v394 = vpack.c.bf16 %v388, %v388
    %396 = vrot.lane.b32.xlu0 %v394, 64
    %v397 = vpop.permute.xlu0 %396
    %v399 = vsel %vm106, %v397, 0
    %401 = vmatpush.bf16.msra.mxu0 0
    %402 = vmatpush.bf16.msra.mxu0 0
    %403 = vmatpush.bf16.msra.mxu0 0
    %404 = vmatpush.bf16.msra.mxu0 0
    %405 = vmatpush.bf16.msra.mxu0 %v272
    %406 = vmatpush.bf16.msra.mxu0 %v270
    %407 = vmatpush.bf16.msra.mxu0 %v268
    %408 = vmatpush.bf16.msra.mxu0 %v266
    %409 = vmatmul.bf16.gmra.mxu0 %v399
    %v410 = vpop.f32.mrf.mxu0
    %v411 = vadd.f32 0.0, %v410
    %v412 = vpop.f32.mrf.mxu0
    %413 = vdwg.mxu0
    %414 = vmatpush.bf16.msra.mxu0 0
    %415 = vmatpush.bf16.msra.mxu0 0
    %416 = vmatpush.bf16.msra.mxu0 0
    %417 = vmatpush.bf16.msra.mxu0 0
    %418 = vmatpush.bf16.msra.mxu0 %v273
    %419 = vmatpush.bf16.msra.mxu0 %v271
    %420 = vmatpush.bf16.msra.mxu0 %v269
    %421 = vmatpush.bf16.msra.mxu0 %v267
    %422 = vmatmul.bf16.gmra.mxu0 %v399
    %v423 = vpop.f32.mrf.mxu0
    %v424 = vadd.f32 0.0, %v423
    %v425 = vpop.f32.mrf.mxu0
    %426 = vdwg.mxu0
    %v427 = vadd.f32 %v392, %v411
    %v428 = vadd.f32 %v393, %v424
    %v429 = vmul.f32 %v427, 0.16666667
    %v430 = vadd.f32 %v429, 0.5
    %v431 = vmax.f32 %v430, 0.0
    %v432 = vmin.f32 %v431, 1.0
    %v433 = vtanh.pop %v428
    %v434 = vmul.f32 %v428, 0.16666667
    %v435 = vadd.f32 %v434, 0.5
    %v436 = vmax.f32 %v435, 0.0
    %v437 = vmin.f32 %v436, 1.0
    %v438 = vmul.f32 %v432, %v386
    %v439 = vmul.f32 %v432, %v433
    %441 = vrot.lane.b32.xlu0 %v439, 64
    %v442 = vpop.permute.xlu0 %441
    %v444 = vadd.f32 %v438, %v442
    %v445 = vtanh.pop %v444
    %v446 = vmul.f32 %v437, %v445
    %s447 = smul.u32 3, 2
    %s448 = smul.addr %s447, 8
    %s449 = scalar_lea.vmem [#allocation2], %s448
    %v450 = vld [vmem:[%s449] sm:$0xff]
    %v451 = vld [vmem:[%s449 + $0x8] sm:$0xff]
    %v452 = vpack.c.bf16 %v446, %v446
    %454 = vrot.lane.b32.xlu0 %v452, 64
    %v455 = vpop.permute.xlu0 %454
    %v457 = vsel %vm106, %v455, 0
    %459 = vmatpush.bf16.msra.mxu0 0
    %460 = vmatpush.bf16.msra.mxu0 0
    %461 = vmatpush.bf16.msra.mxu0 0
    %462 = vmatpush.bf16.msra.mxu0 0
    %463 = vmatpush.bf16.msra.mxu0 %v272
    %464 = vmatpush.bf16.msra.mxu0 %v270
    %465 = vmatpush.bf16.msra.mxu0 %v268
    %466 = vmatpush.bf16.msra.mxu0 %v266
    %467 = vmatmul.bf16.gmra.mxu0 %v457
    %v468 = vpop.f32.mrf.mxu0
    %v469 = vadd.f32 0.0, %v468
    %v470 = vpop.f32.mrf.mxu0
    %471 = vdwg.mxu0
    %472 = vmatpush.bf16.msra.mxu0 0
    %473 = vmatpush.bf16.msra.mxu0 0
    %474 = vmatpush.bf16.msra.mxu0 0
    %475 = vmatpush.bf16.msra.mxu0 0
    %476 = vmatpush.bf16.msra.mxu0 %v273
    %477 = vmatpush.bf16.msra.mxu0 %v271
    %478 = vmatpush.bf16.msra.mxu0 %v269
    %479 = vmatpush.bf16.msra.mxu0 %v267
    %480 = vmatmul.bf16.gmra.mxu0 %v457
    %v481 = vpop.f32.mrf.mxu0
    %v482 = vadd.f32 0.0, %v481
    %v483 = vpop.f32.mrf.mxu0
    %484 = vdwg.mxu0
    %v485 = vadd.f32 %v450, %v469
    %v486 = vadd.f32 %v451, %v482
    %v487 = vmul.f32 %v485, 0.16666667
    %v488 = vadd.f32 %v487, 0.5
    %v489 = vmax.f32 %v488, 0.0
    %v490 = vmin.f32 %v489, 1.0
    %v491 = vtanh.pop %v486
    %v492 = vmul.f32 %v486, 0.16666667
    %v493 = vadd.f32 %v492, 0.5
    %v494 = vmax.f32 %v493, 0.0
    %v495 = vmin.f32 %v494, 1.0
    %v496 = vmul.f32 %v490, %v444
    %v497 = vmul.f32 %v490, %v491
    %499 = vrot.lane.b32.xlu0 %v497, 64
    %v500 = vpop.permute.xlu0 %499
    %v502 = vadd.f32 %v496, %v500
    %v503 = vtanh.pop %v502
    %v504 = vmul.f32 %v495, %v503
    %s505 = smul.u32 4, 2
    %s506 = smul.addr %s505, 8
    %s507 = scalar_lea.vmem [#allocation2], %s506
    %v508 = vld [vmem:[%s507] sm:$0xff]
    %v509 = vld [vmem:[%s507 + $0x8] sm:$0xff]
    %v510 = vpack.c.bf16 %v504, %v504
    %512 = vrot.lane.b32.xlu0 %v510, 64
    %v513 = vpop.permute.xlu0 %512
    %v515 = vsel %vm106, %v513, 0
    %517 = vmatpush.bf16.msra.mxu0 0
    %518 = vmatpush.bf16.msra.mxu0 0
    %519 = vmatpush.bf16.msra.mxu0 0
    %520 = vmatpush.bf16.msra.mxu0 0
    %521 = vmatpush.bf16.msra.mxu0 %v272
    %522 = vmatpush.bf16.msra.mxu0 %v270
    %523 = vmatpush.bf16.msra.mxu0 %v268
    %524 = vmatpush.bf16.msra.mxu0 %v266
    %525 = vmatmul.bf16.gmra.mxu0 %v515
    %v526 = vpop.f32.mrf.mxu0
    %v527 = vadd.f32 0.0, %v526
    %v528 = vpop.f32.mrf.mxu0
    %529 = vdwg.mxu0
    %530 = vmatpush.bf16.msra.mxu0 0
    %531 = vmatpush.bf16.msra.mxu0 0
    %532 = vmatpush.bf16.msra.mxu0 0
    %533 = vmatpush.bf16.msra.mxu0 0
    %534 = vmatpush.bf16.msra.mxu0 %v273
    %535 = vmatpush.bf16.msra.mxu0 %v271
    %536 = vmatpush.bf16.msra.mxu0 %v269
    %537 = vmatpush.bf16.msra.mxu0 %v267
    %538 = vmatmul.bf16.gmra.mxu0 %v515
    %v539 = vpop.f32.mrf.mxu0
    %v540 = vadd.f32 0.0, %v539
    %v541 = vpop.f32.mrf.mxu0
    %542 = vdwg.mxu0
    %v543 = vadd.f32 %v508, %v527
    %v544 = vadd.f32 %v509, %v540
    %v545 = vmul.f32 %v543, 0.16666667
    %v546 = vadd.f32 %v545, 0.5
    %v547 = vmax.f32 %v546, 0.0
    %v548 = vmin.f32 %v547, 1.0
    %v549 = vtanh.pop %v544
    %v550 = vmul.f32 %v544, 0.16666667
    %v551 = vadd.f32 %v550, 0.5
    %v552 = vmax.f32 %v551, 0.0
    %v553 = vmin.f32 %v552, 1.0
    %v554 = vmul.f32 %v548, %v502
    %v555 = vmul.f32 %v548, %v549
    %557 = vrot.lane.b32.xlu0 %v555, 64
    %v558 = vpop.permute.xlu0 %557
    %v560 = vadd.f32 %v554, %v558
    %v561 = vtanh.pop %v560
    %v562 = vmul.f32 %v553, %v561
    %s563 = smul.u32 5, 2
    %s564 = smul.addr %s563, 8
    %s565 = scalar_lea.vmem [#allocation2], %s564
    %v566 = vld [vmem:[%s565] sm:$0xff]
    %v567 = vld [vmem:[%s565 + $0x8] sm:$0xff]
    %v568 = vpack.c.bf16 %v562, %v562
    %570 = vrot.lane.b32.xlu0 %v568, 64
    %v571 = vpop.permute.xlu0 %570
    %v573 = vsel %vm106, %v571, 0
    %575 = vmatpush.bf16.msra.mxu0 0
    %576 = vmatpush.bf16.msra.mxu0 0
    %577 = vmatpush.bf16.msra.mxu0 0
    %578 = vmatpush.bf16.msra.mxu0 0
    %579 = vmatpush.bf16.msra.mxu0 %v272
    %580 = vmatpush.bf16.msra.mxu0 %v270
    %581 = vmatpush.bf16.msra.mxu0 %v268
    %582 = vmatpush.bf16.msra.mxu0 %v266
    %583 = vmatmul.bf16.gmra.mxu0 %v573
    %v584 = vpop.f32.mrf.mxu0
    %v585 = vadd.f32 0.0, %v584
    %v586 = vpop.f32.mrf.mxu0
    %587 = vdwg.mxu0
    %588 = vmatpush.bf16.msra.mxu0 0
    %589 = vmatpush.bf16.msra.mxu0 0
    %590 = vmatpush.bf16.msra.mxu0 0
    %591 = vmatpush.bf16.msra.mxu0 0
    %592 = vmatpush.bf16.msra.mxu0 %v273
    %593 = vmatpush.bf16.msra.mxu0 %v271
    %594 = vmatpush.bf16.msra.mxu0 %v269
    %595 = vmatpush.bf16.msra.mxu0 %v267
    %596 = vmatmul.bf16.gmra.mxu0 %v573
    %v597 = vpop.f32.mrf.mxu0
    %v598 = vadd.f32 0.0, %v597
    %v599 = vpop.f32.mrf.mxu0
    %600 = vdwg.mxu0
    %v601 = vadd.f32 %v566, %v585
    %v602 = vadd.f32 %v567, %v598
    %v603 = vmul.f32 %v601, 0.16666667
    %v604 = vadd.f32 %v603, 0.5
    %v605 = vmax.f32 %v604, 0.0
    %v606 = vmin.f32 %v605, 1.0
    %v607 = vtanh.pop %v602
    %v608 = vmul.f32 %v602, 0.16666667
    %v609 = vadd.f32 %v608, 0.5
    %v610 = vmax.f32 %v609, 0.0
    %v611 = vmin.f32 %v610, 1.0
    %v612 = vmul.f32 %v606, %v560
    %v613 = vmul.f32 %v606, %v607
    %615 = vrot.lane.b32.xlu0 %v613, 64
    %v616 = vpop.permute.xlu0 %615
    %v618 = vadd.f32 %v612, %v616
    %v619 = vtanh.pop %v618
    %v620 = vmul.f32 %v611, %v619
    %s621 = smul.u32 6, 2
    %s622 = smul.addr %s621, 8
    %s623 = scalar_lea.vmem [#allocation2], %s622
    %v624 = vld [vmem:[%s623] sm:$0xff]
    %v625 = vld [vmem:[%s623 + $0x8] sm:$0xff]
    %v626 = vpack.c.bf16 %v620, %v620
    %628 = vrot.lane.b32.xlu0 %v626, 64
    %v629 = vpop.permute.xlu0 %628
    %v631 = vsel %vm106, %v629, 0
    %633 = vmatpush.bf16.msra.mxu0 0
    %634 = vmatpush.bf16.msra.mxu0 0
    %635 = vmatpush.bf16.msra.mxu0 0
    %636 = vmatpush.bf16.msra.mxu0 0
    %637 = vmatpush.bf16.msra.mxu0 %v272
    %638 = vmatpush.bf16.msra.mxu0 %v270
    %639 = vmatpush.bf16.msra.mxu0 %v268
    %640 = vmatpush.bf16.msra.mxu0 %v266
    %641 = vmatmul.bf16.gmra.mxu0 %v631
    %v642 = vpop.f32.mrf.mxu0
    %v643 = vadd.f32 0.0, %v642
    %v644 = vpop.f32.mrf.mxu0
    %645 = vdwg.mxu0
    %646 = vmatpush.bf16.msra.mxu0 0
    %647 = vmatpush.bf16.msra.mxu0 0
    %648 = vmatpush.bf16.msra.mxu0 0
    %649 = vmatpush.bf16.msra.mxu0 0
    %650 = vmatpush.bf16.msra.mxu0 %v273
    %651 = vmatpush.bf16.msra.mxu0 %v271
    %652 = vmatpush.bf16.msra.mxu0 %v269
    %653 = vmatpush.bf16.msra.mxu0 %v267
    %654 = vmatmul.bf16.gmra.mxu0 %v631
    %v655 = vpop.f32.mrf.mxu0
    %v656 = vadd.f32 0.0, %v655
    %v657 = vpop.f32.mrf.mxu0
    %658 = vdwg.mxu0
    %v659 = vadd.f32 %v624, %v643
    %v660 = vadd.f32 %v625, %v656
    %v661 = vmul.f32 %v659, 0.16666667
    %v662 = vadd.f32 %v661, 0.5
    %v663 = vmax.f32 %v662, 0.0
    %v664 = vmin.f32 %v663, 1.0
    %v665 = vtanh.pop %v660
    %v666 = vmul.f32 %v660, 0.16666667
    %v667 = vadd.f32 %v666, 0.5
    %v668 = vmax.f32 %v667, 0.0
    %v669 = vmin.f32 %v668, 1.0
    %v670 = vmul.f32 %v664, %v618
    %v671 = vmul.f32 %v664, %v665
    %673 = vrot.lane.b32.xlu0 %v671, 64
    %v674 = vpop.permute.xlu0 %673
    %v676 = vadd.f32 %v670, %v674
    %v677 = vtanh.pop %v676
    %v678 = vmul.f32 %v669, %v677
    %s679 = smul.u32 7, 2
    %s680 = smul.addr %s679, 8
    %s681 = scalar_lea.vmem [#allocation2], %s680
    %v682 = vld [vmem:[%s681] sm:$0xff]
    %v683 = vld [vmem:[%s681 + $0x8] sm:$0xff]
    %v684 = vpack.c.bf16 %v678, %v678
    %686 = vrot.lane.b32.xlu0 %v684, 64
    %v687 = vpop.permute.xlu0 %686
    %v689 = vsel %vm106, %v687, 0
    %691 = vmatpush.bf16.msra.mxu0 0
    %692 = vmatpush.bf16.msra.mxu0 0
    %693 = vmatpush.bf16.msra.mxu0 0
    %694 = vmatpush.bf16.msra.mxu0 0
    %695 = vmatpush.bf16.msra.mxu0 %v272
    %696 = vmatpush.bf16.msra.mxu0 %v270
    %697 = vmatpush.bf16.msra.mxu0 %v268
    %698 = vmatpush.bf16.msra.mxu0 %v266
    %699 = vmatmul.bf16.gmra.mxu0 %v689
    %v700 = vpop.f32.mrf.mxu0
    %v701 = vadd.f32 0.0, %v700
    %v702 = vpop.f32.mrf.mxu0
    %703 = vdwg.mxu0
    %704 = vmatpush.bf16.msra.mxu0 0
    %705 = vmatpush.bf16.msra.mxu0 0
    %706 = vmatpush.bf16.msra.mxu0 0
    %707 = vmatpush.bf16.msra.mxu0 0
    %708 = vmatpush.bf16.msra.mxu0 %v273
    %709 = vmatpush.bf16.msra.mxu0 %v271
    %710 = vmatpush.bf16.msra.mxu0 %v269
    %711 = vmatpush.bf16.msra.mxu0 %v267
    %712 = vmatmul.bf16.gmra.mxu0 %v689
    %v713 = vpop.f32.mrf.mxu0
    %v714 = vadd.f32 0.0, %v713
    %v715 = vpop.f32.mrf.mxu0
    %716 = vdwg.mxu0
    %v717 = vadd.f32 %v682, %v701
    %v718 = vadd.f32 %v683, %v714
    %v719 = vmul.f32 %v717, 0.16666667
    %v720 = vadd.f32 %v719, 0.5
    %v721 = vmax.f32 %v720, 0.0
    %v722 = vmin.f32 %v721, 1.0
    %v723 = vtanh.pop %v718
    %v724 = vmul.f32 %v718, 0.16666667
    %v725 = vadd.f32 %v724, 0.5
    %v726 = vmax.f32 %v725, 0.0
    %v727 = vmin.f32 %v726, 1.0
    %v728 = vmul.f32 %v722, %v676
    %v729 = vmul.f32 %v722, %v723
    %731 = vrot.lane.b32.xlu0 %v729, 64
    %v732 = vpop.permute.xlu0 %731
    %v734 = vadd.f32 %v728, %v732
    %v735 = vtanh.pop %v734
    %v736 = vmul.f32 %v727, %v735
    %v737 = vld [vmem:[#allocation9] sm:$0xff]
    %v738 = vld [vmem:[#allocation9 + $0x8] sm:$0xff]
    %v739 = vld [vmem:[#allocation9 + $0x10] sm:$0xff]
    %v740 = vld [vmem:[#allocation9 + $0x18] sm:$0xff]
    %v741 = vld [vmem:[#allocation9 + $0x20] sm:$0xff]
    %v742 = vld [vmem:[#allocation9 + $0x28] sm:$0xff]
    %v743 = vld [vmem:[#allocation9 + $0x30] sm:$0xff]
    %v744 = vld [vmem:[#allocation9 + $0x38] sm:$0xff]
    %v745 = vld [vmem:[#allocation9 + $0x40] sm:$0xff]
    %v746 = vld [vmem:[#allocation9 + $0x48] sm:$0xff]
    %v747 = vld [vmem:[#allocation9 + $0x50] sm:$0xff]
    %v748 = vld [vmem:[#allocation9 + $0x58] sm:$0xff]
    %v749 = vld [vmem:[#allocation9 + $0x60] sm:$0xff]
    %v750 = vld [vmem:[#allocation9 + $0x68] sm:$0xff]
    %v751 = vld [vmem:[#allocation9 + $0x70] sm:$0xff]
    %v752 = vld [vmem:[#allocation9 + $0x78] sm:$0xff]
    %v753 = vld [vmem:[#allocation9 + $0x80] sm:$0xff]
    %v754 = vld [vmem:[#allocation9 + $0x88] sm:$0xff]
    %v755 = vld [vmem:[#allocation9 + $0x90] sm:$0xff]
    %v756 = vld [vmem:[#allocation9 + $0x98] sm:$0xff]
    %v757 = vld [vmem:[#allocation9 + $0xa0] sm:$0xff]
    %v758 = vld [vmem:[#allocation9 + $0xa8] sm:$0xff]
    %v759 = vld [vmem:[#allocation9 + $0xb0] sm:$0xff]
    %v760 = vld [vmem:[#allocation9 + $0xb8] sm:$0xff]
    %v761 = vld [vmem:[#allocation9 + $0xc0] sm:$0xff]
    %v762 = vld [vmem:[#allocation9 + $0xc8] sm:$0xff]
    %764 = vrot.lane.b32.xlu0 %v736, 64
    %v765 = vpop.permute.xlu0 %764
    %v766 = vsel %vm106, %v765, 0
    %768 = vmatpush.msra.mxu0 0.0
    %769 = vmatpush.msra.mxu0 0.0
    %770 = vmatpush.msra.mxu0 0.0
    %771 = vmatpush.msra.mxu0 0.0
    %772 = vmatpush.msra.mxu0 0.0
    %773 = vmatpush.msra.mxu0 0.0
    %774 = vmatpush.msra.mxu0 0.0
    %775 = vmatpush.msra.mxu0 0.0
    %776 = vmatpush.msra.mxu0 %v744
    %777 = vmatpush.msra.mxu0 %v743
    %778 = vmatpush.msra.mxu0 %v742
    %779 = vmatpush.msra.mxu0 %v741
    %780 = vmatpush.msra.mxu0 %v740
    %781 = vmatpush.msra.mxu0 %v739
    %782 = vmatpush.msra.mxu0 %v738
    %783 = vmatpush.msra.mxu0 %v737
    %784 = vmatmul.f32.gmra.mxu0 %v766
    %v785 = vpop.f32.mrf.mxu0
    %v786 = vadd.f32 %v761, %v785
    %787 = vdwg.mxu0
    %vm788 = vcmp.ge.f32.partialorder %v786, 0.0
    %v789 = vmul.f32 %v786, 0.01
    %v790 = vsel %vm788, %v786, %v789
    %791 = vmatpush.msra.mxu0 %v760
    %792 = vmatpush.msra.mxu0 %v759
    %793 = vmatpush.msra.mxu0 %v758
    %794 = vmatpush.msra.mxu0 %v757
    %795 = vmatpush.msra.mxu0 %v756
    %796 = vmatpush.msra.mxu0 %v755
    %797 = vmatpush.msra.mxu0 %v754
    %798 = vmatpush.msra.mxu0 %v753
    %799 = vmatpush.msra.mxu0 %v752
    %800 = vmatpush.msra.mxu0 %v751
    %801 = vmatpush.msra.mxu0 %v750
    %802 = vmatpush.msra.mxu0 %v749
    %803 = vmatpush.msra.mxu0 %v748
    %804 = vmatpush.msra.mxu0 %v747
    %805 = vmatpush.msra.mxu0 %v746
    %806 = vmatpush.msra.mxu0 %v745
    %807 = vmatmul.f32.gmra.mxu0 %v790
    %v808 = vpop.f32.mrf.mxu0
    %v809 = vadd.f32 %v762, %v808
    %810 = vdwg.mxu0
    %811 = vst [vmem:[#allocation11] sm:$0xff] %v809
    // Predicated region
    $region34: #{tpu_custom_call.1} parent=1 // pred_check
      _
    $region35: #{tpu_custom_call.1} parent=1 // pred_check_branch
      %813 = sbr.rel (0) target = $region37
    $region36: #{tpu_custom_call.1} parent=1 // pred_region
      %815 = vsyncadd [#allocation5], 0
      %s817 = sshll.u32 [#allocation11], 4
      %s818 = int_to_ptr.vmem [resolvable:$true] %s817
      %s819 = sshll.u32 %s4, 4
      %s820 = int_to_ptr.hbm [resolvable:$true] %s819
      %822 = dma.vmem_to_hbm [thread:$0]  %s818, 128, %s820, [#allocation5]
    $region37: #{tpu_custom_call.1} parent=1 // pred_fallthru
      _
    // Predicated region
    $region38: #{tpu_custom_call.1} parent=1 // pred_check
      _
    $region39: #{tpu_custom_call.1} parent=1 // pred_check_branch
      %824 = sbr.rel (0) target = $region41
    $region40: #{tpu_custom_call.1} parent=1 // pred_region
      %826 = dma.done [#allocation5], 128
    $region41: #{tpu_custom_call.1} parent=1 // pred_fallthru
      _
    %827 = vsyncpa [#allocation4], 1
    %828 = vsyncpa [#allocation7], 1
    %829 = vsyncpa [#allocation10], 1
    %830 = vsyncpa [#allocation5], 1

</llo_original>
